<compile_context>
chip_gen: v5e
topology: v5e:2x2
jax: 0.10.0
libtpu: 0.0.40
codegen_flags: <defaults>
</compile_context>

<pallas_src>
from functools import partial

import jax
import jax.numpy as jnp
from jax.experimental import pallas as pl
from jax.experimental.pallas import tpu as pltpu

# Row indices inside the packed (6, W) small-parameter slab.
_V_G1, _V_B1, _V_G2, _V_B2, _V_BMLP1, _V_BM2 = range(6)


def _layernorm(x, gamma, beta, eps=1e-5):
    mu = jnp.mean(x, axis=-1, keepdims=True)
    xc = x - mu
    var = jnp.mean(xc * xc, axis=-1, keepdims=True)
    return xc * jax.lax.rsqrt(var + eps) * gamma + beta


def listener_kernel(pc_ref, txt_ref, vec_ref,
                    wq1_ref, wkv1_ref, wq2_ref, wkv2_ref,
                    wmlp1_ref, wm2_ref,
                    out_ref,
                    *, n_heads, head_dim):
    f32 = jnp.float32
    cd = wq1_ref.dtype                       # matmul compute dtype (f32 or bf16)

    pc = pc_ref[...]                         # (Bb, Np, Dc)
    txt = txt_ref[...]                       # (Bb, Nt, Dt)
    Bb, Np, Dc = pc.shape
    _, Nt, Dt = txt.shape
    inner = n_heads * head_dim
    H = wm2_ref.shape[0]
    O = out_ref.shape[1]

    # unpack the small-parameter slab
    g1 = vec_ref[_V_G1:_V_G1 + 1, :Dc]
    b1 = vec_ref[_V_B1:_V_B1 + 1, :Dc]
    g2 = vec_ref[_V_G2:_V_G2 + 1, :Dt]
    b2 = vec_ref[_V_B2:_V_B2 + 1, :Dt]
    bmlp1 = vec_ref[_V_BMLP1:_V_BMLP1 + 1, :H]
    bm2 = vec_ref[_V_BM2:_V_BM2 + 1, :O]

    # Additive key mask for attn1, built ONCE per block and shared by all heads:
    # mask = (text_embed != 0)[:, :, 0]   -> bias (Bb, 1, Nt)
    keep = jnp.transpose(txt[:, :, 0:1], (0, 2, 1)) != 0.0
    mask_bias = jnp.where(keep, 0.0, -1e30).astype(f32)

    pcn = _layernorm(pc, g1, b1)             # (Bb, Np, Dc)
    txtn = _layernorm(txt, g2, b2)           # (Bb, Nt, Dt)

    pc2d = pc.reshape(Bb * Np, Dc).astype(cd)
    txt2d = txt.reshape(Bb * Nt, Dt).astype(cd)

    # Projections.  Softmax scale is pre-folded into wq1/wq2; K and V weights
    # are concatenated so one matmul yields both.
    q1 = jnp.dot(pcn.reshape(Bb * Np, Dc).astype(cd), wq1_ref[...],
                 preferred_element_type=f32).reshape(Bb, Np, inner)
    kv1 = jnp.dot(txt2d, wkv1_ref[...], preferred_element_type=f32)  # (Bb*Nt, 2I)
    k1 = kv1[:, :inner].reshape(Bb, Nt, inner)
    v1 = kv1[:, inner:].reshape(Bb, Nt, inner)

    q2 = jnp.dot(txtn.reshape(Bb * Nt, Dt).astype(cd), wq2_ref[...],
                 preferred_element_type=f32).reshape(Bb, Nt, inner)
    kv2 = jnp.dot(pc2d, wkv2_ref[...], preferred_element_type=f32)   # (Bb*Np, 2I)
    k2 = kv2[:, :inner].reshape(Bb, Np, inner)
    v2 = kv2[:, inner:].reshape(Bb, Np, inner)

    def pooled_attention(q, k, v, bias):
        """Mean-over-query cross attention with ONE softmax pass for all heads.

        q: (Bb, Nq, I), k/v: (Bb, Nk, I), bias: (Bb, 1, Nk) additive or None.
        Returns a list of n_heads tensors of shape (Bb, 1, head_dim).
        """
        Nq, Nk = q.shape[1], k.shape[1]
        # Per-head QK^T (single-batch-dim dots; tiny MXU pushes), stacked along
        # the query axis so all VPU/EUP/XLU softmax work is done once.
        sims = [jnp.einsum("bqd,bkd->bqk",
                           q[:, :, h * head_dim:(h + 1) * head_dim].astype(cd),
                           k[:, :, h * head_dim:(h + 1) * head_dim].astype(cd),
                           preferred_element_type=f32)
                for h in range(n_heads)]
        sim = jnp.concatenate(sims, axis=1)                   # (Bb, h*Nq, Nk)
        if bias is not None:
            sim = sim + bias                                  # mask applied once
        m = jnp.max(sim, axis=-1, keepdims=True)
        p = jnp.exp(sim - m)
        denom = jnp.sum(p, axis=-1, keepdims=True)
        attn = p * pl.reciprocal(denom, approx=True)
        # Pool over queries BEFORE the PV contraction (exact: mean commutes
        # with the linear PV matmul) -> PV work shrinks by a factor of Nq.
        pooled_attn = jnp.mean(attn.reshape(Bb, n_heads, Nq, Nk), axis=2)
        outs = []
        for h in range(n_heads):
            pa = pooled_attn[:, h:h + 1, :].astype(cd)        # (Bb, 1, Nk)
            vh = v[:, :, h * head_dim:(h + 1) * head_dim].astype(cd)
            outs.append(jnp.einsum("bqk,bkd->bqd", pa, vh,
                                   preferred_element_type=f32))   # (Bb, 1, hd)
        return outs

    heads1 = pooled_attention(q1, k1, v1, mask_bias)   # attn1: Q=norm1(pc),  K/V=text
    heads2 = pooled_attention(q2, k2, v2, None)        # attn2: Q=norm2(text), K/V=pc

    # concat([mean_x1, mean_x2]) @ wm1 + bm1, with Wo/bo folded into wmlp1/bmlp1
    # at pack time -> a single K = 2*inner matmul.
    pooled_all = jnp.concatenate(heads1 + heads2, axis=-1).reshape(Bb, 2 * inner)
    hid = jnp.dot(pooled_all.astype(cd), wmlp1_ref[...],
                  preferred_element_type=f32) + bmlp1
    hid = jnp.maximum(hid, 0.0)
    logits = jnp.dot(hid.astype(cd), wm2_ref[...],
                     preferred_element_type=f32) + bm2
    out_ref[...] = logits.astype(out_ref.dtype)


# --------------------------- parameter packing (call ONCE at load time) -----
def pack_listener_params(params, *, n_heads, head_dim, compute_dtype=jnp.float32):
    """Fold scale/Wo/bo/bm1 and concat K/V weights; pack the small vectors."""
    f32 = jnp.float32
    Dc = params["wq1"].shape[0]
    Dt = params["wq2"].shape[0]
    H = params["wm1"].shape[1]
    O = params["wm2"].shape[1]
    scale = float(head_dim) ** -0.5

    wm1_c = params["wm1"].astype(f32)[:Dc, :]
    wm1_t = params["wm1"].astype(f32)[Dc:Dc + Dt, :]
    # Exact fusion of the per-branch output projections into the MLP:
    w_mlp1 = jnp.concatenate([params["wo1"].astype(f32) @ wm1_c,
                              params["wo2"].astype(f32) @ wm1_t], axis=0)   # (2I, H)
    b_mlp1 = (params["bo1"].astype(f32) @ wm1_c
              + params["bo2"].astype(f32) @ wm1_t
              + params["bm1"].astype(f32))                                  # (1, H)

    Vw = max(Dc, Dt, H, O)
    rows = []
    for v in (params["g1"], params["bn1"], params["g2"], params["bn2"],
              b_mlp1, params["bm2"]):
        v = v.reshape(-1).astype(f32)
        rows.append(jnp.pad(v, (0, Vw - v.shape[0])))
    vec_slab = jnp.stack(rows, axis=0)                                      # (6, Vw)

    weights = (
        (params["wq1"].astype(f32) * scale).astype(compute_dtype),                 # (Dc, I)
        jnp.concatenate([params["wk1"], params["wv1"]], axis=1).astype(compute_dtype),  # (Dt, 2I)
        (params["wq2"].astype(f32) * scale).astype(compute_dtype),                 # (Dt, I)
        jnp.concatenate([params["wk2"], params["wv2"]], axis=1).astype(compute_dtype),  # (Dc, 2I)
        w_mlp1.astype(compute_dtype),                                               # (2I, H)
        params["wm2"].astype(compute_dtype),                                        # (H, O)
    )
    return vec_slab, weights


# --------------------------- batch-block sizing ------------------------------
def _vmem_capacity_bytes():
    try:
        return int(pltpu.get_tpu_info().vmem_capacity_bytes)
    except Exception:
        return 64 * 2**20          # conservative: v7x per-TensorCore VMEM


def _pick_batch_block(B, per_elem_bytes, vmem_budget_bytes):
    """Largest sublane-aligned batch block fitting the VMEM budget, >=2 steps."""
    if B <= 8:
        return B                   # one block; (Bb, O) block equals full dims -> legal
    cap = max(8, int(vmem_budget_bytes // max(per_elem_bytes, 1)))
    bb = min((cap // 8) * 8, ((B + 7) // 8) * 8)
    bb = max(bb, 8)
    # keep at least 2 grid steps so v7x can shard blocks across both TensorCores
    while bb > 8 and pl.cdiv(B, bb) < 2:
        bb = max(8, ((bb // 2) // 8) * 8)
    return bb


# --------------------------- wrapper -----------------------------------------
def attention_listener_v2(pc_feats, text_embed, packed_params, *, n_heads, head_dim):
    vec_slab, weights = packed_params
    B, Np, Dc = pc_feats.shape
    _, Nt, Dt = text_embed.shape
    inner = n_heads * head_dim
    H, O = weights[-1].shape

    act_bytes = pc_feats.dtype.itemsize
    # Rough per-batch-element VMEM footprint: double-buffered inputs + q/k/v
    # projections + both branches' (heads, Nq, Nk) softmax intermediates (f32).
    per_elem = (2 * (Np * Dc + Nt * Dt) * act_bytes
                + 3 * inner * (Np + Nt) * 4
                + 6 * n_heads * Np * Nt * 4)
    vmem_cap = _vmem_capacity_bytes()
    Bb = _pick_batch_block(B, per_elem, vmem_cap // 2)

    Bp = pl.cdiv(B, Bb) * Bb
    if Bp != B:   # pad so every grid block is full (zero rows are numerically benign)
        pad = ((0, Bp - B), (0, 0), (0, 0))
        pc_feats = jnp.pad(pc_feats, pad)
        text_embed = jnp.pad(text_embed, pad)

    def const_spec(arr):
        nd = arr.ndim
        return pl.BlockSpec(arr.shape, lambda i, _nd=nd: (0,) * _nd)

    in_specs = ([pl.BlockSpec((Bb, Np, Dc), lambda i: (i, 0, 0)),
                 pl.BlockSpec((Bb, Nt, Dt), lambda i: (i, 0, 0)),
                 const_spec(vec_slab)]
                + [const_spec(w) for w in weights])
    out_spec = pl.BlockSpec((Bb, O), lambda i: (i, 0))

    weight_bytes = sum(w.size * w.dtype.itemsize for w in weights) + vec_slab.size * 4
    vmem_limit = int(min(vmem_cap * 3 // 4,
                         max(32 * 2**20, 3 * Bb * per_elem + 2 * weight_bytes)))

    kernel = partial(listener_kernel, n_heads=n_heads, head_dim=head_dim)
    out = pl.pallas_call(
        kernel,
        out_shape=jax.ShapeDtypeStruct((Bp, O), jnp.float32),
        grid_spec=pltpu.PrefetchScalarGridSpec(
            num_scalar_prefetch=0,
            grid=(Bp // Bb,),
            in_specs=in_specs,
            out_specs=out_spec,
        ),
        # batch blocks are independent -> shard them across v7x's 2 TensorCores
        compiler_params=pltpu.CompilerParams(
            dimension_semantics=("parallel",),
            vmem_limit_bytes=vmem_limit,
        ),
    )(pc_feats, text_embed, vec_slab, *weights)
    return out[:B] if Bp != B else out


# --------------------------- pure-JAX reference (for checking) ---------------
def reference_forward(pc_feats, text_embed, params, *, n_heads, head_dim):
    def layernorm(x, g, b):
        mu = jnp.mean(x, -1, keepdims=True)
        var = jnp.mean((x - mu) ** 2, -1, keepdims=True)
        return (x - mu) / jnp.sqrt(var + 1e-5) * g + b

    def cross_attn(x, ctx, wq, wk, wv, wo, bo, mask=None):
        B, Nq, _ = x.shape
        Nk = ctx.shape[1]
        q = (x @ wq).reshape(B, Nq, n_heads, head_dim)
        k = (ctx @ wk).reshape(B, Nk, n_heads, head_dim)
        v = (ctx @ wv).reshape(B, Nk, n_heads, head_dim)
        sim = jnp.einsum("bihd,bjhd->bhij", q, k) * (head_dim ** -0.5)
        if mask is not None:
            sim = jnp.where(mask[:, None, None, :], sim, -jnp.finfo(jnp.float32).max)
        attn = jax.nn.softmax(sim, axis=-1)
        out = jnp.einsum("bhij,bjhd->bihd", attn, v).reshape(B, Nq, n_heads * head_dim)
        return out @ wo + bo

    mask = text_embed[:, :, 0] != 0
    x1 = cross_attn(layernorm(pc_feats, params["g1"], params["bn1"]), text_embed,
                    params["wq1"], params["wk1"], params["wv1"],
                    params["wo1"], params["bo1"], mask=mask)
    x2 = cross_attn(layernorm(text_embed, params["g2"], params["bn2"]), pc_feats,
                    params["wq2"], params["wk2"], params["wv2"],
                    params["wo2"], params["bo2"], mask=None)
    feats = jnp.concatenate([jnp.mean(x1, axis=1), jnp.mean(x2, axis=1)], axis=1)
    hid = jnp.maximum(feats @ params["wm1"] + params["bm1"], 0.0)
    return hid @ params["wm2"] + params["bm2"]


if __name__ == "__main__":
    B, Np, Nt = 2, 16, 8
    Dc, Dt = 32, 32
    n_heads, head_dim = 4, 8
    I = n_heads * head_dim
    H, O = 32, 4

    key = jax.random.PRNGKey(0)
    ks = jax.random.split(key, 16)

    pc_feats = jax.random.normal(ks[0], (B, Np, Dc), jnp.float32)
    text_embed = jax.random.normal(ks[1], (B, Nt, Dt), jnp.float32)
    # zero a couple of text tokens so the key mask is actually exercised
    text_embed = text_embed.at[1, 6:, :].set(0.0)

    def w(k, shape, scale=0.1):
        return scale * jax.random.normal(k, shape, jnp.float32)

    params = {
        # LayerNorms (PyTorch default init: weight=1, bias=0)
        "g1": jnp.ones((1, Dc), jnp.float32), "bn1": jnp.zeros((1, Dc), jnp.float32),
        "g2": jnp.ones((1, Dt), jnp.float32), "bn2": jnp.zeros((1, Dt), jnp.float32),
        # attn1: query_dim=Dc, context_dim=Dt
        "wq1": w(ks[2], (Dc, I)), "wk1": w(ks[3], (Dt, I)), "wv1": w(ks[4], (Dt, I)),
        "wo1": w(ks[5], (I, Dc)), "bo1": w(ks[6], (1, Dc)),
        # attn2: query_dim=Dt, context_dim=Dc
        "wq2": w(ks[7], (Dt, I)), "wk2": w(ks[8], (Dc, I)), "wv2": w(ks[9], (Dc, I)),
        "wo2": w(ks[10], (I, Dt)), "bo2": w(ks[11], (1, Dt)),
        # mlp_decoder (logit encoder): Linear(Dc+Dt, H) -> ReLU -> Linear(H, O)
        "wm1": w(ks[12], (Dc + Dt, H)), "bm1": w(ks[13], (1, H)),
        "wm2": w(ks[14], (H, O)), "bm2": w(ks[15], (1, O)),
    }

    # Pack / fuse parameters ONCE (hoisted out of the per-forward path).
    packed = pack_listener_params(params, n_heads=n_heads, head_dim=head_dim)

    out = attention_listener_v2(pc_feats, text_embed, packed,
                                n_heads=n_heads, head_dim=head_dim)
    out = jax.block_until_ready(out)

    ref = reference_forward(pc_feats, text_embed, params,
                            n_heads=n_heads, head_dim=head_dim)
    assert out.shape == (B, O), out.shape
    # tolerance accounts for the approximate (EUP) softmax reciprocal and the
    # pack-time weight-fusion reassociation
    assert jnp.allclose(out, ref, atol=2e-3, rtol=1e-2), (out, ref)
    print("KERNEL_OK")
</pallas_src>

<mosaic_0001>
module attributes {stable_mosaic.version = 11 : i64} {
  func.func @listener_kernel(%arg0: i32, %arg1: memref<2x16x32xf32, #tpu.memory_space<vmem>>, %arg2: memref<2x8x32xf32, #tpu.memory_space<vmem>>, %arg3: memref<6x32xf32, #tpu.memory_space<vmem>>, %arg4: memref<32x32xf32, #tpu.memory_space<vmem>>, %arg5: memref<32x64xf32, #tpu.memory_space<vmem>>, %arg6: memref<32x32xf32, #tpu.memory_space<vmem>>, %arg7: memref<32x64xf32, #tpu.memory_space<vmem>>, %arg8: memref<64x32xf32, #tpu.memory_space<vmem>>, %arg9: memref<32x4xf32, #tpu.memory_space<vmem>>, %arg10: memref<2x4xf32, #tpu.memory_space<vmem>>) attributes {dimension_semantics = [#tpu.dimension_semantics<parallel>], iteration_bounds = array<i64: 1>, scalar_prefetch = 0 : i64, scratch_operands = 0 : i64, tpu.core_type = #tpu.core_type<tc>, window_params = [{transform_indices = @transform_0, window_bounds = array<i64: 2, 16, 32>}, {transform_indices = @transform_1, window_bounds = array<i64: 2, 8, 32>}, {pipeline_mode = #tpu.pipeline_mode<synchronous>, transform_indices = @transform_2, window_bounds = array<i64: 6, 32>}, {pipeline_mode = #tpu.pipeline_mode<synchronous>, transform_indices = @transform_3, window_bounds = array<i64: 32, 32>}, {pipeline_mode = #tpu.pipeline_mode<synchronous>, transform_indices = @transform_4, window_bounds = array<i64: 32, 64>}, {pipeline_mode = #tpu.pipeline_mode<synchronous>, transform_indices = @transform_5, window_bounds = array<i64: 32, 32>}, {pipeline_mode = #tpu.pipeline_mode<synchronous>, transform_indices = @transform_6, window_bounds = array<i64: 32, 64>}, {pipeline_mode = #tpu.pipeline_mode<synchronous>, transform_indices = @transform_7, window_bounds = array<i64: 64, 32>}, {pipeline_mode = #tpu.pipeline_mode<synchronous>, transform_indices = @transform_8, window_bounds = array<i64: 32, 4>}, {transform_indices = @transform_9, window_bounds = array<i64: 2, 4>}]} {
    %c0 = arith.constant 0 : index
    %c0_0 = arith.constant 0 : index
    %c0_1 = arith.constant 0 : index
    %0 = vector.load %arg1[%c0, %c0_0, %c0_1] : memref<2x16x32xf32, #tpu.memory_space<vmem>>, vector<2x16x32xf32>
    %c0_2 = arith.constant 0 : index
    %c0_3 = arith.constant 0 : index
    %c0_4 = arith.constant 0 : index
    %1 = vector.load %arg2[%c0_2, %c0_3, %c0_4] : memref<2x8x32xf32, #tpu.memory_space<vmem>>, vector<2x8x32xf32>
    %c0_5 = arith.constant 0 : index
    %c0_6 = arith.constant 0 : index
    %2 = vector.load %arg3[%c0_5, %c0_6] : memref<6x32xf32, #tpu.memory_space<vmem>>, vector<1x32xf32>
    %c1 = arith.constant 1 : index
    %c0_7 = arith.constant 0 : index
    %3 = vector.load %arg3[%c1, %c0_7] : memref<6x32xf32, #tpu.memory_space<vmem>>, vector<1x32xf32>
    %c2 = arith.constant 2 : index
    %c0_8 = arith.constant 0 : index
    %4 = vector.load %arg3[%c2, %c0_8] : memref<6x32xf32, #tpu.memory_space<vmem>>, vector<1x32xf32>
    %c3 = arith.constant 3 : index
    %c0_9 = arith.constant 0 : index
    %5 = vector.load %arg3[%c3, %c0_9] : memref<6x32xf32, #tpu.memory_space<vmem>>, vector<1x32xf32>
    %c4 = arith.constant 4 : index
    %c0_10 = arith.constant 0 : index
    %6 = vector.load %arg3[%c4, %c0_10] : memref<6x32xf32, #tpu.memory_space<vmem>>, vector<1x32xf32>
    %c5 = arith.constant 5 : index
    %c0_11 = arith.constant 0 : index
    %7 = vector.load %arg3[%c5, %c0_11] : memref<6x32xf32, #tpu.memory_space<vmem>>, vector<1x4xf32>
    %8 = vector.extract_strided_slice %1 {offsets = [0, 0, 0], sizes = [2, 8, 1], strides = [1, 1, 1]} : vector<2x8x32xf32> to vector<2x8x1xf32>
    %9 = tpu.transpose %8, [0, 2, 1] : vector<2x8x1xf32> -> vector<2x1x8xf32>
    %cst = arith.constant 0.000000e+00 : f32
    %10 = vector.broadcast %cst : f32 to vector<2x1x8xf32>
    %11 = arith.cmpf one, %9, %10 : vector<2x1x8xf32>
    %cst_12 = arith.constant 0.000000e+00 : f32
    %cst_13 = arith.constant -1.000000e+30 : f32
    %12 = vector.broadcast %cst_12 : f32 to vector<2x1x8xf32>
    %13 = vector.broadcast %cst_13 : f32 to vector<2x1x8xf32>
    %14 = arith.select %11, %12, %13 : vector<2x1x8xi1>, vector<2x1x8xf32>
    %cst_14 = arith.constant dense<0.000000e+00> : vector<2x16xf32>
    %15 = vector.multi_reduction <add>, %0, %cst_14 [2] : vector<2x16x32xf32> to vector<2x16xf32>
    %16 = vector.shape_cast %15 : vector<2x16xf32> to vector<2x16x1xf32>
    %cst_15 = arith.constant 3.200000e+01 : f32
    %17 = vector.broadcast %cst_15 : f32 to vector<2x16x1xf32>
    %18 = arith.divf %16, %17 : vector<2x16x1xf32>
    %19 = vector.broadcast %18 : vector<2x16x1xf32> to vector<2x16x32xf32>
    %20 = arith.subf %0, %19 : vector<2x16x32xf32>
    %21 = arith.mulf %20, %20 : vector<2x16x32xf32>
    %cst_16 = arith.constant dense<0.000000e+00> : vector<2x16xf32>
    %22 = vector.multi_reduction <add>, %21, %cst_16 [2] : vector<2x16x32xf32> to vector<2x16xf32>
    %23 = vector.shape_cast %22 : vector<2x16xf32> to vector<2x16x1xf32>
    %cst_17 = arith.constant 3.200000e+01 : f32
    %24 = vector.broadcast %cst_17 : f32 to vector<2x16x1xf32>
    %25 = arith.divf %23, %24 : vector<2x16x1xf32>
    %cst_18 = arith.constant 9.99999974E-6 : f32
    %26 = vector.broadcast %cst_18 : f32 to vector<2x16x1xf32>
    %27 = arith.addf %25, %26 : vector<2x16x1xf32>
    %28 = math.rsqrt %27 : vector<2x16x1xf32>
    %29 = vector.broadcast %28 : vector<2x16x1xf32> to vector<2x16x32xf32>
    %30 = arith.mulf %20, %29 : vector<2x16x32xf32>
    %31 = vector.shape_cast %2 : vector<1x32xf32> to vector<1x1x32xf32>
    %32 = vector.broadcast %31 : vector<1x1x32xf32> to vector<2x16x32xf32>
    %33 = arith.mulf %30, %32 : vector<2x16x32xf32>
    %34 = vector.shape_cast %3 : vector<1x32xf32> to vector<1x1x32xf32>
    %35 = vector.broadcast %34 : vector<1x1x32xf32> to vector<2x16x32xf32>
    %36 = arith.addf %33, %35 : vector<2x16x32xf32>
    %cst_19 = arith.constant dense<0.000000e+00> : vector<2x8xf32>
    %37 = vector.multi_reduction <add>, %1, %cst_19 [2] : vector<2x8x32xf32> to vector<2x8xf32>
    %38 = vector.shape_cast %37 : vector<2x8xf32> to vector<2x8x1xf32>
    %cst_20 = arith.constant 3.200000e+01 : f32
    %39 = vector.broadcast %cst_20 : f32 to vector<2x8x1xf32>
    %40 = arith.divf %38, %39 : vector<2x8x1xf32>
    %41 = vector.broadcast %40 : vector<2x8x1xf32> to vector<2x8x32xf32>
    %42 = arith.subf %1, %41 : vector<2x8x32xf32>
    %43 = arith.mulf %42, %42 : vector<2x8x32xf32>
    %cst_21 = arith.constant dense<0.000000e+00> : vector<2x8xf32>
    %44 = vector.multi_reduction <add>, %43, %cst_21 [2] : vector<2x8x32xf32> to vector<2x8xf32>
    %45 = vector.shape_cast %44 : vector<2x8xf32> to vector<2x8x1xf32>
    %cst_22 = arith.constant 3.200000e+01 : f32
    %46 = vector.broadcast %cst_22 : f32 to vector<2x8x1xf32>
    %47 = arith.divf %45, %46 : vector<2x8x1xf32>
    %cst_23 = arith.constant 9.99999974E-6 : f32
    %48 = vector.broadcast %cst_23 : f32 to vector<2x8x1xf32>
    %49 = arith.addf %47, %48 : vector<2x8x1xf32>
    %50 = math.rsqrt %49 : vector<2x8x1xf32>
    %51 = vector.broadcast %50 : vector<2x8x1xf32> to vector<2x8x32xf32>
    %52 = arith.mulf %42, %51 : vector<2x8x32xf32>
    %53 = vector.shape_cast %4 : vector<1x32xf32> to vector<1x1x32xf32>
    %54 = vector.broadcast %53 : vector<1x1x32xf32> to vector<2x8x32xf32>
    %55 = arith.mulf %52, %54 : vector<2x8x32xf32>
    %56 = vector.shape_cast %5 : vector<1x32xf32> to vector<1x1x32xf32>
    %57 = vector.broadcast %56 : vector<1x1x32xf32> to vector<2x8x32xf32>
    %58 = arith.addf %55, %57 : vector<2x8x32xf32>
    %59 = vector.shape_cast %0 : vector<2x16x32xf32> to vector<32x32xf32>
    %60 = vector.shape_cast %1 : vector<2x8x32xf32> to vector<16x32xf32>
    %61 = vector.shape_cast %36 : vector<2x16x32xf32> to vector<32x32xf32>
    %c0_24 = arith.constant 0 : index
    %c0_25 = arith.constant 0 : index
    %62 = vector.load %arg4[%c0_24, %c0_25] : memref<32x32xf32, #tpu.memory_space<vmem>>, vector<32x32xf32>
    %cst_26 = arith.constant dense<0.000000e+00> : vector<32x32xf32>
    %63 = tpu.matmul %61, %62, %cst_26 {dimension_numbers = #tpu.dot_dimension_numbers<[1], [0], [0], [1], [0, 0, 1, 1], [], []>} : vector<32x32xf32>, vector<32x32xf32>, vector<32x32xf32> -> vector<32x32xf32>
    %64 = vector.shape_cast %63 : vector<32x32xf32> to vector<2x16x32xf32>
    %c0_27 = arith.constant 0 : index
    %c0_28 = arith.constant 0 : index
    %65 = vector.load %arg5[%c0_27, %c0_28] : memref<32x64xf32, #tpu.memory_space<vmem>>, vector<32x64xf32>
    %cst_29 = arith.constant dense<0.000000e+00> : vector<16x64xf32>
    %66 = tpu.matmul %60, %65, %cst_29 {dimension_numbers = #tpu.dot_dimension_numbers<[1], [0], [0], [1], [0, 0, 1, 1], [], []>} : vector<16x32xf32>, vector<32x64xf32>, vector<16x64xf32> -> vector<16x64xf32>
    %67 = vector.extract_strided_slice %66 {offsets = [0, 0], sizes = [16, 32], strides = [1, 1]} : vector<16x64xf32> to vector<16x32xf32>
    %68 = vector.shape_cast %67 : vector<16x32xf32> to vector<2x8x32xf32>
    %69 = vector.extract_strided_slice %66 {offsets = [0, 32], sizes = [16, 32], strides = [1, 1]} : vector<16x64xf32> to vector<16x32xf32>
    %70 = vector.shape_cast %69 : vector<16x32xf32> to vector<2x8x32xf32>
    %71 = vector.shape_cast %58 : vector<2x8x32xf32> to vector<16x32xf32>
    %c0_30 = arith.constant 0 : index
    %c0_31 = arith.constant 0 : index
    %72 = vector.load %arg6[%c0_30, %c0_31] : memref<32x32xf32, #tpu.memory_space<vmem>>, vector<32x32xf32>
    %cst_32 = arith.constant dense<0.000000e+00> : vector<16x32xf32>
    %73 = tpu.matmul %71, %72, %cst_32 {dimension_numbers = #tpu.dot_dimension_numbers<[1], [0], [0], [1], [0, 0, 1, 1], [], []>} : vector<16x32xf32>, vector<32x32xf32>, vector<16x32xf32> -> vector<16x32xf32>
    %74 = vector.shape_cast %73 : vector<16x32xf32> to vector<2x8x32xf32>
    %c0_33 = arith.constant 0 : index
    %c0_34 = arith.constant 0 : index
    %75 = vector.load %arg7[%c0_33, %c0_34] : memref<32x64xf32, #tpu.memory_space<vmem>>, vector<32x64xf32>
    %cst_35 = arith.constant dense<0.000000e+00> : vector<32x64xf32>
    %76 = tpu.matmul %59, %75, %cst_35 {dimension_numbers = #tpu.dot_dimension_numbers<[1], [0], [0], [1], [0, 0, 1, 1], [], []>} : vector<32x32xf32>, vector<32x64xf32>, vector<32x64xf32> -> vector<32x64xf32>
    %77 = vector.extract_strided_slice %76 {offsets = [0, 0], sizes = [32, 32], strides = [1, 1]} : vector<32x64xf32> to vector<32x32xf32>
    %78 = vector.shape_cast %77 : vector<32x32xf32> to vector<2x16x32xf32>
    %79 = vector.extract_strided_slice %76 {offsets = [0, 32], sizes = [32, 32], strides = [1, 1]} : vector<32x64xf32> to vector<32x32xf32>
    %80 = vector.shape_cast %79 : vector<32x32xf32> to vector<2x16x32xf32>
    %81 = vector.extract_strided_slice %64 {offsets = [0, 0, 0], sizes = [2, 16, 8], strides = [1, 1, 1]} : vector<2x16x32xf32> to vector<2x16x8xf32>
    %82 = vector.extract_strided_slice %68 {offsets = [0, 0, 0], sizes = [2, 8, 8], strides = [1, 1, 1]} : vector<2x8x32xf32> to vector<2x8x8xf32>
    "tpu.trace_start"() <{level = 10 : i32, message = "bqd,bkd->bqk"}> : () -> ()
    %cst_36 = arith.constant dense<0.000000e+00> : vector<2x16x8xf32>
    %83 = tpu.matmul %81, %82, %cst_36 {dimension_numbers = #tpu.dot_dimension_numbers<[2], [2], [1], [1], [0, 0, 0, 1, 1, 1], [0], [0]>} : vector<2x16x8xf32>, vector<2x8x8xf32>, vector<2x16x8xf32> -> vector<2x16x8xf32>
    "tpu.trace_stop"() : () -> ()
    %84 = vector.extract_strided_slice %64 {offsets = [0, 0, 8], sizes = [2, 16, 8], strides = [1, 1, 1]} : vector<2x16x32xf32> to vector<2x16x8xf32>
    %85 = vector.extract_strided_slice %68 {offsets = [0, 0, 8], sizes = [2, 8, 8], strides = [1, 1, 1]} : vector<2x8x32xf32> to vector<2x8x8xf32>
    "tpu.trace_start"() <{level = 10 : i32, message = "bqd,bkd->bqk"}> : () -> ()
    %cst_37 = arith.constant dense<0.000000e+00> : vector<2x16x8xf32>
    %86 = tpu.matmul %84, %85, %cst_37 {dimension_numbers = #tpu.dot_dimension_numbers<[2], [2], [1], [1], [0, 0, 0, 1, 1, 1], [0], [0]>} : vector<2x16x8xf32>, vector<2x8x8xf32>, vector<2x16x8xf32> -> vector<2x16x8xf32>
    "tpu.trace_stop"() : () -> ()
    %87 = vector.extract_strided_slice %64 {offsets = [0, 0, 16], sizes = [2, 16, 8], strides = [1, 1, 1]} : vector<2x16x32xf32> to vector<2x16x8xf32>
    %88 = vector.extract_strided_slice %68 {offsets = [0, 0, 16], sizes = [2, 8, 8], strides = [1, 1, 1]} : vector<2x8x32xf32> to vector<2x8x8xf32>
    "tpu.trace_start"() <{level = 10 : i32, message = "bqd,bkd->bqk"}> : () -> ()
    %cst_38 = arith.constant dense<0.000000e+00> : vector<2x16x8xf32>
    %89 = tpu.matmul %87, %88, %cst_38 {dimension_numbers = #tpu.dot_dimension_numbers<[2], [2], [1], [1], [0, 0, 0, 1, 1, 1], [0], [0]>} : vector<2x16x8xf32>, vector<2x8x8xf32>, vector<2x16x8xf32> -> vector<2x16x8xf32>
    "tpu.trace_stop"() : () -> ()
    %90 = vector.extract_strided_slice %64 {offsets = [0, 0, 24], sizes = [2, 16, 8], strides = [1, 1, 1]} : vector<2x16x32xf32> to vector<2x16x8xf32>
    %91 = vector.extract_strided_slice %68 {offsets = [0, 0, 24], sizes = [2, 8, 8], strides = [1, 1, 1]} : vector<2x8x32xf32> to vector<2x8x8xf32>
    "tpu.trace_start"() <{level = 10 : i32, message = "bqd,bkd->bqk"}> : () -> ()
    %cst_39 = arith.constant dense<0.000000e+00> : vector<2x16x8xf32>
    %92 = tpu.matmul %90, %91, %cst_39 {dimension_numbers = #tpu.dot_dimension_numbers<[2], [2], [1], [1], [0, 0, 0, 1, 1, 1], [0], [0]>} : vector<2x16x8xf32>, vector<2x8x8xf32>, vector<2x16x8xf32> -> vector<2x16x8xf32>
    "tpu.trace_stop"() : () -> ()
    %93 = tpu.concatenate %83, %86, %89, %92 in 1 : vector<2x16x8xf32>, vector<2x16x8xf32>, vector<2x16x8xf32>, vector<2x16x8xf32> -> vector<2x64x8xf32>
    %94 = vector.broadcast %14 : vector<2x1x8xf32> to vector<2x64x8xf32>
    %95 = arith.addf %93, %94 : vector<2x64x8xf32>
    %cst_40 = arith.constant dense<0xFF800000> : vector<2x64xf32>
    %96 = vector.multi_reduction <maximumf>, %95, %cst_40 [2] : vector<2x64x8xf32> to vector<2x64xf32>
    %97 = vector.shape_cast %96 : vector<2x64xf32> to vector<2x64x1xf32>
    %98 = vector.broadcast %97 : vector<2x64x1xf32> to vector<2x64x8xf32>
    %99 = arith.subf %95, %98 : vector<2x64x8xf32>
    %100 = math.exp %99 : vector<2x64x8xf32>
    %cst_41 = arith.constant dense<0.000000e+00> : vector<2x64xf32>
    %101 = vector.multi_reduction <add>, %100, %cst_41 [2] : vector<2x64x8xf32> to vector<2x64xf32>
    %102 = vector.shape_cast %101 : vector<2x64xf32> to vector<2x64x1xf32>
    %103 = tpu.reciprocal %102 {approx = true} : vector<2x64x1xf32> -> vector<2x64x1xf32>
    %104 = vector.broadcast %103 : vector<2x64x1xf32> to vector<2x64x8xf32>
    %105 = arith.mulf %100, %104 : vector<2x64x8xf32>
    %106 = vector.shape_cast %105 : vector<2x64x8xf32> to vector<2x4x16x8xf32>
    %cst_42 = arith.constant dense<0.000000e+00> : vector<2x4x8xf32>
    %107 = vector.multi_reduction <add>, %106, %cst_42 [2] : vector<2x4x16x8xf32> to vector<2x4x8xf32>
    %cst_43 = arith.constant 1.600000e+01 : f32
    %108 = vector.broadcast %cst_43 : f32 to vector<2x4x8xf32>
    %109 = arith.divf %107, %108 : vector<2x4x8xf32>
    %110 = vector.extract_strided_slice %109 {offsets = [0, 0, 0], sizes = [2, 1, 8], strides = [1, 1, 1]} : vector<2x4x8xf32> to vector<2x1x8xf32>
    %111 = vector.extract_strided_slice %70 {offsets = [0, 0, 0], sizes = [2, 8, 8], strides = [1, 1, 1]} : vector<2x8x32xf32> to vector<2x8x8xf32>
    "tpu.trace_start"() <{level = 10 : i32, message = "bqk,bkd->bqd"}> : () -> ()
    %cst_44 = arith.constant dense<0.000000e+00> : vector<2x1x8xf32>
    %112 = tpu.matmul %110, %111, %cst_44 {dimension_numbers = #tpu.dot_dimension_numbers<[2], [1], [1], [2], [0, 0, 0, 1, 1, 2], [0], [0]>} : vector<2x1x8xf32>, vector<2x8x8xf32>, vector<2x1x8xf32> -> vector<2x1x8xf32>
    "tpu.trace_stop"() : () -> ()
    %113 = vector.extract_strided_slice %109 {offsets = [0, 1, 0], sizes = [2, 1, 8], strides = [1, 1, 1]} : vector<2x4x8xf32> to vector<2x1x8xf32>
    %114 = vector.extract_strided_slice %70 {offsets = [0, 0, 8], sizes = [2, 8, 8], strides = [1, 1, 1]} : vector<2x8x32xf32> to vector<2x8x8xf32>
    "tpu.trace_start"() <{level = 10 : i32, message = "bqk,bkd->bqd"}> : () -> ()
    %cst_45 = arith.constant dense<0.000000e+00> : vector<2x1x8xf32>
    %115 = tpu.matmul %113, %114, %cst_45 {dimension_numbers = #tpu.dot_dimension_numbers<[2], [1], [1], [2], [0, 0, 0, 1, 1, 2], [0], [0]>} : vector<2x1x8xf32>, vector<2x8x8xf32>, vector<2x1x8xf32> -> vector<2x1x8xf32>
    "tpu.trace_stop"() : () -> ()
    %116 = vector.extract_strided_slice %109 {offsets = [0, 2, 0], sizes = [2, 1, 8], strides = [1, 1, 1]} : vector<2x4x8xf32> to vector<2x1x8xf32>
    %117 = vector.extract_strided_slice %70 {offsets = [0, 0, 16], sizes = [2, 8, 8], strides = [1, 1, 1]} : vector<2x8x32xf32> to vector<2x8x8xf32>
    "tpu.trace_start"() <{level = 10 : i32, message = "bqk,bkd->bqd"}> : () -> ()
    %cst_46 = arith.constant dense<0.000000e+00> : vector<2x1x8xf32>
    %118 = tpu.matmul %116, %117, %cst_46 {dimension_numbers = #tpu.dot_dimension_numbers<[2], [1], [1], [2], [0, 0, 0, 1, 1, 2], [0], [0]>} : vector<2x1x8xf32>, vector<2x8x8xf32>, vector<2x1x8xf32> -> vector<2x1x8xf32>
    "tpu.trace_stop"() : () -> ()
    %119 = vector.extract_strided_slice %109 {offsets = [0, 3, 0], sizes = [2, 1, 8], strides = [1, 1, 1]} : vector<2x4x8xf32> to vector<2x1x8xf32>
    %120 = vector.extract_strided_slice %70 {offsets = [0, 0, 24], sizes = [2, 8, 8], strides = [1, 1, 1]} : vector<2x8x32xf32> to vector<2x8x8xf32>
    "tpu.trace_start"() <{level = 10 : i32, message = "bqk,bkd->bqd"}> : () -> ()
    %cst_47 = arith.constant dense<0.000000e+00> : vector<2x1x8xf32>
    %121 = tpu.matmul %119, %120, %cst_47 {dimension_numbers = #tpu.dot_dimension_numbers<[2], [1], [1], [2], [0, 0, 0, 1, 1, 2], [0], [0]>} : vector<2x1x8xf32>, vector<2x8x8xf32>, vector<2x1x8xf32> -> vector<2x1x8xf32>
    "tpu.trace_stop"() : () -> ()
    %122 = vector.extract_strided_slice %74 {offsets = [0, 0, 0], sizes = [2, 8, 8], strides = [1, 1, 1]} : vector<2x8x32xf32> to vector<2x8x8xf32>
    %123 = vector.extract_strided_slice %78 {offsets = [0, 0, 0], sizes = [2, 16, 8], strides = [1, 1, 1]} : vector<2x16x32xf32> to vector<2x16x8xf32>
    "tpu.trace_start"() <{level = 10 : i32, message = "bqd,bkd->bqk"}> : () -> ()
    %cst_48 = arith.constant dense<0.000000e+00> : vector<2x8x16xf32>
    %124 = tpu.matmul %122, %123, %cst_48 {dimension_numbers = #tpu.dot_dimension_numbers<[2], [2], [1], [1], [0, 0, 0, 1, 1, 1], [0], [0]>} : vector<2x8x8xf32>, vector<2x16x8xf32>, vector<2x8x16xf32> -> vector<2x8x16xf32>
    "tpu.trace_stop"() : () -> ()
    %125 = vector.extract_strided_slice %74 {offsets = [0, 0, 8], sizes = [2, 8, 8], strides = [1, 1, 1]} : vector<2x8x32xf32> to vector<2x8x8xf32>
    %126 = vector.extract_strided_slice %78 {offsets = [0, 0, 8], sizes = [2, 16, 8], strides = [1, 1, 1]} : vector<2x16x32xf32> to vector<2x16x8xf32>
    "tpu.trace_start"() <{level = 10 : i32, message = "bqd,bkd->bqk"}> : () -> ()
    %cst_49 = arith.constant dense<0.000000e+00> : vector<2x8x16xf32>
    %127 = tpu.matmul %125, %126, %cst_49 {dimension_numbers = #tpu.dot_dimension_numbers<[2], [2], [1], [1], [0, 0, 0, 1, 1, 1], [0], [0]>} : vector<2x8x8xf32>, vector<2x16x8xf32>, vector<2x8x16xf32> -> vector<2x8x16xf32>
    "tpu.trace_stop"() : () -> ()
    %128 = vector.extract_strided_slice %74 {offsets = [0, 0, 16], sizes = [2, 8, 8], strides = [1, 1, 1]} : vector<2x8x32xf32> to vector<2x8x8xf32>
    %129 = vector.extract_strided_slice %78 {offsets = [0, 0, 16], sizes = [2, 16, 8], strides = [1, 1, 1]} : vector<2x16x32xf32> to vector<2x16x8xf32>
    "tpu.trace_start"() <{level = 10 : i32, message = "bqd,bkd->bqk"}> : () -> ()
    %cst_50 = arith.constant dense<0.000000e+00> : vector<2x8x16xf32>
    %130 = tpu.matmul %128, %129, %cst_50 {dimension_numbers = #tpu.dot_dimension_numbers<[2], [2], [1], [1], [0, 0, 0, 1, 1, 1], [0], [0]>} : vector<2x8x8xf32>, vector<2x16x8xf32>, vector<2x8x16xf32> -> vector<2x8x16xf32>
    "tpu.trace_stop"() : () -> ()
    %131 = vector.extract_strided_slice %74 {offsets = [0, 0, 24], sizes = [2, 8, 8], strides = [1, 1, 1]} : vector<2x8x32xf32> to vector<2x8x8xf32>
    %132 = vector.extract_strided_slice %78 {offsets = [0, 0, 24], sizes = [2, 16, 8], strides = [1, 1, 1]} : vector<2x16x32xf32> to vector<2x16x8xf32>
    "tpu.trace_start"() <{level = 10 : i32, message = "bqd,bkd->bqk"}> : () -> ()
    %cst_51 = arith.constant dense<0.000000e+00> : vector<2x8x16xf32>
    %133 = tpu.matmul %131, %132, %cst_51 {dimension_numbers = #tpu.dot_dimension_numbers<[2], [2], [1], [1], [0, 0, 0, 1, 1, 1], [0], [0]>} : vector<2x8x8xf32>, vector<2x16x8xf32>, vector<2x8x16xf32> -> vector<2x8x16xf32>
    "tpu.trace_stop"() : () -> ()
    %134 = tpu.concatenate %124, %127, %130, %133 in 1 : vector<2x8x16xf32>, vector<2x8x16xf32>, vector<2x8x16xf32>, vector<2x8x16xf32> -> vector<2x32x16xf32>
    %cst_52 = arith.constant dense<0xFF800000> : vector<2x32xf32>
    %135 = vector.multi_reduction <maximumf>, %134, %cst_52 [2] : vector<2x32x16xf32> to vector<2x32xf32>
    %136 = vector.shape_cast %135 : vector<2x32xf32> to vector<2x32x1xf32>
    %137 = vector.broadcast %136 : vector<2x32x1xf32> to vector<2x32x16xf32>
    %138 = arith.subf %134, %137 : vector<2x32x16xf32>
    %139 = math.exp %138 : vector<2x32x16xf32>
    %cst_53 = arith.constant dense<0.000000e+00> : vector<2x32xf32>
    %140 = vector.multi_reduction <add>, %139, %cst_53 [2] : vector<2x32x16xf32> to vector<2x32xf32>
    %141 = vector.shape_cast %140 : vector<2x32xf32> to vector<2x32x1xf32>
    %142 = tpu.reciprocal %141 {approx = true} : vector<2x32x1xf32> -> vector<2x32x1xf32>
    %143 = vector.broadcast %142 : vector<2x32x1xf32> to vector<2x32x16xf32>
    %144 = arith.mulf %139, %143 : vector<2x32x16xf32>
    %145 = vector.shape_cast %144 : vector<2x32x16xf32> to vector<2x4x8x16xf32>
    %cst_54 = arith.constant dense<0.000000e+00> : vector<2x4x16xf32>
    %146 = vector.multi_reduction <add>, %145, %cst_54 [2] : vector<2x4x8x16xf32> to vector<2x4x16xf32>
    %cst_55 = arith.constant 8.000000e+00 : f32
    %147 = vector.broadcast %cst_55 : f32 to vector<2x4x16xf32>
    %148 = arith.divf %146, %147 : vector<2x4x16xf32>
    %149 = vector.extract_strided_slice %148 {offsets = [0, 0, 0], sizes = [2, 1, 16], strides = [1, 1, 1]} : vector<2x4x16xf32> to vector<2x1x16xf32>
    %150 = vector.extract_strided_slice %80 {offsets = [0, 0, 0], sizes = [2, 16, 8], strides = [1, 1, 1]} : vector<2x16x32xf32> to vector<2x16x8xf32>
    "tpu.trace_start"() <{level = 10 : i32, message = "bqk,bkd->bqd"}> : () -> ()
    %cst_56 = arith.constant dense<0.000000e+00> : vector<2x1x8xf32>
    %151 = tpu.matmul %149, %150, %cst_56 {dimension_numbers = #tpu.dot_dimension_numbers<[2], [1], [1], [2], [0, 0, 0, 1, 1, 2], [0], [0]>} : vector<2x1x16xf32>, vector<2x16x8xf32>, vector<2x1x8xf32> -> vector<2x1x8xf32>
    "tpu.trace_stop"() : () -> ()
    %152 = vector.extract_strided_slice %148 {offsets = [0, 1, 0], sizes = [2, 1, 16], strides = [1, 1, 1]} : vector<2x4x16xf32> to vector<2x1x16xf32>
    %153 = vector.extract_strided_slice %80 {offsets = [0, 0, 8], sizes = [2, 16, 8], strides = [1, 1, 1]} : vector<2x16x32xf32> to vector<2x16x8xf32>
    "tpu.trace_start"() <{level = 10 : i32, message = "bqk,bkd->bqd"}> : () -> ()
    %cst_57 = arith.constant dense<0.000000e+00> : vector<2x1x8xf32>
    %154 = tpu.matmul %152, %153, %cst_57 {dimension_numbers = #tpu.dot_dimension_numbers<[2], [1], [1], [2], [0, 0, 0, 1, 1, 2], [0], [0]>} : vector<2x1x16xf32>, vector<2x16x8xf32>, vector<2x1x8xf32> -> vector<2x1x8xf32>
    "tpu.trace_stop"() : () -> ()
    %155 = vector.extract_strided_slice %148 {offsets = [0, 2, 0], sizes = [2, 1, 16], strides = [1, 1, 1]} : vector<2x4x16xf32> to vector<2x1x16xf32>
    %156 = vector.extract_strided_slice %80 {offsets = [0, 0, 16], sizes = [2, 16, 8], strides = [1, 1, 1]} : vector<2x16x32xf32> to vector<2x16x8xf32>
    "tpu.trace_start"() <{level = 10 : i32, message = "bqk,bkd->bqd"}> : () -> ()
    %cst_58 = arith.constant dense<0.000000e+00> : vector<2x1x8xf32>
    %157 = tpu.matmul %155, %156, %cst_58 {dimension_numbers = #tpu.dot_dimension_numbers<[2], [1], [1], [2], [0, 0, 0, 1, 1, 2], [0], [0]>} : vector<2x1x16xf32>, vector<2x16x8xf32>, vector<2x1x8xf32> -> vector<2x1x8xf32>
    "tpu.trace_stop"() : () -> ()
    %158 = vector.extract_strided_slice %148 {offsets = [0, 3, 0], sizes = [2, 1, 16], strides = [1, 1, 1]} : vector<2x4x16xf32> to vector<2x1x16xf32>
    %159 = vector.extract_strided_slice %80 {offsets = [0, 0, 24], sizes = [2, 16, 8], strides = [1, 1, 1]} : vector<2x16x32xf32> to vector<2x16x8xf32>
    "tpu.trace_start"() <{level = 10 : i32, message = "bqk,bkd->bqd"}> : () -> ()
    %cst_59 = arith.constant dense<0.000000e+00> : vector<2x1x8xf32>
    %160 = tpu.matmul %158, %159, %cst_59 {dimension_numbers = #tpu.dot_dimension_numbers<[2], [1], [1], [2], [0, 0, 0, 1, 1, 2], [0], [0]>} : vector<2x1x16xf32>, vector<2x16x8xf32>, vector<2x1x8xf32> -> vector<2x1x8xf32>
    "tpu.trace_stop"() : () -> ()
    %161 = tpu.concatenate %112, %115, %118, %121, %151, %154, %157, %160 in 2 : vector<2x1x8xf32>, vector<2x1x8xf32>, vector<2x1x8xf32>, vector<2x1x8xf32>, vector<2x1x8xf32>, vector<2x1x8xf32>, vector<2x1x8xf32>, vector<2x1x8xf32> -> vector<2x1x64xf32>
    %162 = vector.shape_cast %161 : vector<2x1x64xf32> to vector<2x64xf32>
    %c0_60 = arith.constant 0 : index
    %c0_61 = arith.constant 0 : index
    %163 = vector.load %arg8[%c0_60, %c0_61] : memref<64x32xf32, #tpu.memory_space<vmem>>, vector<64x32xf32>
    %cst_62 = arith.constant dense<0.000000e+00> : vector<2x32xf32>
    %164 = tpu.matmul %162, %163, %cst_62 {dimension_numbers = #tpu.dot_dimension_numbers<[1], [0], [0], [1], [0, 0, 1, 1], [], []>} : vector<2x64xf32>, vector<64x32xf32>, vector<2x32xf32> -> vector<2x32xf32>
    %165 = vector.broadcast %6 : vector<1x32xf32> to vector<2x32xf32>
    %166 = arith.addf %164, %165 : vector<2x32xf32>
    %cst_63 = arith.constant 0.000000e+00 : f32
    %167 = vector.broadcast %cst_63 : f32 to vector<2x32xf32>
    %168 = arith.maximumf %166, %167 : vector<2x32xf32>
    %c0_64 = arith.constant 0 : index
    %c0_65 = arith.constant 0 : index
    %169 = vector.load %arg9[%c0_64, %c0_65] : memref<32x4xf32, #tpu.memory_space<vmem>>, vector<32x4xf32>
    %cst_66 = arith.constant dense<0.000000e+00> : vector<2x4xf32>
    %170 = tpu.matmul %168, %169, %cst_66 {dimension_numbers = #tpu.dot_dimension_numbers<[1], [0], [0], [1], [0, 0, 1, 1], [], []>} : vector<2x32xf32>, vector<32x4xf32>, vector<2x4xf32> -> vector<2x4xf32>
    %171 = vector.broadcast %7 : vector<1x4xf32> to vector<2x4xf32>
    %172 = arith.addf %170, %171 : vector<2x4xf32>
    %c0_67 = arith.constant 0 : index
    %c0_68 = arith.constant 0 : index
    %173 = vector.load %arg10[%c0_67, %c0_68] : memref<2x4xf32, #tpu.memory_space<vmem>>, vector<2x4xf32>
    tpu.vector_store %arg10[%c0_67, %c0_68], %172 {strides = array<i32>} : memref<2x4xf32, #tpu.memory_space<vmem>>, vector<2x4xf32>,
    return
  }
  func.func @transform_0(%arg0: i32) -> (i32, i32, i32) {
    %c0_i32 = arith.constant 0 : i32
    %c0_i32_0 = arith.constant 0 : i32
    %c0_i32_1 = arith.constant 0 : i32
    return %arg0, %c0_i32, %c0_i32_0 : i32, i32, i32
  }
  func.func @transform_1(%arg0: i32) -> (i32, i32, i32) {
    %c0_i32 = arith.constant 0 : i32
    %c0_i32_0 = arith.constant 0 : i32
    %c0_i32_1 = arith.constant 0 : i32
    return %arg0, %c0_i32, %c0_i32_0 : i32, i32, i32
  }
  func.func @transform_2(%arg0: i32) -> (i32, i32) {
    %c0_i32 = arith.constant 0 : i32
    %c0_i32_0 = arith.constant 0 : i32
    %c0_i32_1 = arith.constant 0 : i32
    return %c0_i32, %c0_i32_0 : i32, i32
  }
  func.func @transform_3(%arg0: i32) -> (i32, i32) {
    %c0_i32 = arith.constant 0 : i32
    %c0_i32_0 = arith.constant 0 : i32
    %c0_i32_1 = arith.constant 0 : i32
    return %c0_i32, %c0_i32_0 : i32, i32
  }
  func.func @transform_4(%arg0: i32) -> (i32, i32) {
    %c0_i32 = arith.constant 0 : i32
    %c0_i32_0 = arith.constant 0 : i32
    %c0_i32_1 = arith.constant 0 : i32
    return %c0_i32, %c0_i32_0 : i32, i32
  }
  func.func @transform_5(%arg0: i32) -> (i32, i32) {
    %c0_i32 = arith.constant 0 : i32
    %c0_i32_0 = arith.constant 0 : i32
    %c0_i32_1 = arith.constant 0 : i32
    return %c0_i32, %c0_i32_0 : i32, i32
  }
  func.func @transform_6(%arg0: i32) -> (i32, i32) {
    %c0_i32 = arith.constant 0 : i32
    %c0_i32_0 = arith.constant 0 : i32
    %c0_i32_1 = arith.constant 0 : i32
    return %c0_i32, %c0_i32_0 : i32, i32
  }
  func.func @transform_7(%arg0: i32) -> (i32, i32) {
    %c0_i32 = arith.constant 0 : i32
    %c0_i32_0 = arith.constant 0 : i32
    %c0_i32_1 = arith.constant 0 : i32
    return %c0_i32, %c0_i32_0 : i32, i32
  }
  func.func @transform_8(%arg0: i32) -> (i32, i32) {
    %c0_i32 = arith.constant 0 : i32
    %c0_i32_0 = arith.constant 0 : i32
    %c0_i32_1 = arith.constant 0 : i32
    return %c0_i32, %c0_i32_0 : i32, i32
  }
  func.func @transform_9(%arg0: i32) -> (i32, i32) {
    %c0_i32 = arith.constant 0 : i32
    %c0_i32_0 = arith.constant 0 : i32
    return %arg0, %c0_i32 : i32, i32
  }
}

</mosaic_0001>

<llo_original>
// kernel: tpu_custom_call.1
$region0: #{tpu_custom_call.1}
  #allocation0 [shape = 'u32[]', space=smem, size = 0x4, offset = 0x4, fixed_abs, tag = 'smem constant byte address 0x4 - core index']
  #allocation1 [shape = 'u32[72,128]{1,0:T(1,128)}', space=vmem, size = 0x9000, scoped, tag = 'internal scratch']
  %s0 = inlined_call_operand.vmem [shape: f32[2,16,32], index: 0, kind: input, shape index: {}]
  %s1 = inlined_call_operand.hbm [shape: f32[2,8,32], index: 1, kind: input, shape index: {}]
  %s2 = inlined_call_operand.hbm [shape: f32[6,32], index: 2, kind: input, shape index: {}]
  %s3 = inlined_call_operand.vmem [shape: f32[32,32], index: 3, kind: input, shape index: {}]
  %s4 = inlined_call_operand.vmem [shape: f32[32,64], index: 4, kind: input, shape index: {}]
  %s5 = inlined_call_operand.hbm [shape: f32[32,32], index: 5, kind: input, shape index: {}]
  %s6 = inlined_call_operand.hbm [shape: f32[32,64], index: 6, kind: input, shape index: {}]
  %s7 = inlined_call_operand.vmem [shape: f32[64,32], index: 7, kind: input, shape index: {}]
  %s8 = inlined_call_operand.vmem [shape: f32[32,4], index: 8, kind: input, shape index: {}]
  %s9 = inlined_call_operand.hbm [shape: f32[2,4], index: 9, kind: output, shape index: {}]
  %s10 = sld [smem:[#allocation0]]
  $region62: #{tpu_custom_call.1} parent=0
    _
  %s12 = ssub.s32 1, %s10
  %s13 = scalar_select 0, %s12, %s10
  $region1: #{tpu_custom_call.1} parent=0
    #allocation2 [shape = 'u8[8192]{0}', space=vmem, size = 0x2000, scoped, tag = 'input window, operand 1, single buffered']
    #allocation3 [shape = 's32[1]{0}', space=sflag, size = 0x4, scoped, tag = 'scoped memory for tpu_custom_call.1']
    #allocation4 [shape = 's32[1]{0}', space=sflag, size = 0x4, scoped, tag = 'scoped memory for tpu_custom_call.1']
    #allocation5 [shape = 'u8[4096]{0}', space=vmem, size = 0x1000, scoped, tag = 'input window, operand 2, single buffered']
    #allocation6 [shape = 's32[1]{0}', space=sflag, size = 0x4, scoped, tag = 'scoped memory for tpu_custom_call.1']
    #allocation7 [shape = 'u8[16384]{0}', space=vmem, size = 0x4000, scoped, tag = 'input window, operand 5, single buffered']
    #allocation8 [shape = 'u8[16384]{0}', space=vmem, size = 0x4000, scoped, tag = 'input window, operand 6, single buffered']
    #allocation9 [shape = 's32[1]{0}', space=sflag, size = 0x4, scoped, tag = 'scoped memory for tpu_custom_call.1']
    #allocation10 [shape = 'u8[1024]{0}', space=vmem, size = 0x400, scoped, tag = 'output window, operand 0, single buffered']
    %14 = vsyncpa [#allocation3], 0
    %15 = vsyncpa [#allocation6], 0
    %16 = vsyncpa [#allocation9], 0
    %17 = vsyncpa [#allocation4], 0
    // Predicated region
    $region2: #{tpu_custom_call.1} parent=1 // pred_check
      _
    $region3: #{tpu_custom_call.1} parent=1 // pred_check_branch
      %19 = sbr.rel (0) target = $region5
    $region4: #{tpu_custom_call.1} parent=1 // pred_region
      _
    $region5: #{tpu_custom_call.1} parent=1 // pred_fallthru
      _
    // Predicated region
    $region6: #{tpu_custom_call.1} parent=1 // pred_check
      _
    $region7: #{tpu_custom_call.1} parent=1 // pred_check_branch
      %21 = sbr.rel (0) target = $region9
    $region8: #{tpu_custom_call.1} parent=1 // pred_region
      %23 = vsyncadd [#allocation3], 0
      %s24 = sshll.u32 %s1, 4
      %s25 = int_to_ptr.hbm [resolvable:$true] %s24
      %s26 = sshll.u32 [#allocation2], 4
      %s27 = int_to_ptr.vmem [resolvable:$true] %s26
      %32 = dma.hbm_to_vmem [thread:$0]  %s25, 256, %s27, [#allocation3], 128, 128, 8
    $region9: #{tpu_custom_call.1} parent=1 // pred_fallthru
      _
    // Predicated region
    $region10: #{tpu_custom_call.1} parent=1 // pred_check
      _
    $region11: #{tpu_custom_call.1} parent=1 // pred_check_branch
      %34 = sbr.rel (0) target = $region13
    $region12: #{tpu_custom_call.1} parent=1 // pred_region
      %36 = vsyncadd [#allocation6], 0
      %s38 = sshll.u32 %s2, 4
      %s39 = int_to_ptr.hbm [resolvable:$true] %s38
      %s40 = sshll.u32 [#allocation5], 4
      %s41 = int_to_ptr.vmem [resolvable:$true] %s40
      %43 = dma.hbm_to_vmem [thread:$0]  %s39, 128, %s41, [#allocation6]
    $region13: #{tpu_custom_call.1} parent=1 // pred_fallthru
      _
    // Predicated region
    $region14: #{tpu_custom_call.1} parent=1 // pred_check
      _
    $region15: #{tpu_custom_call.1} parent=1 // pred_check_branch
      %45 = sbr.rel (0) target = $region17
    $region16: #{tpu_custom_call.1} parent=1 // pred_region
      _
    $region17: #{tpu_custom_call.1} parent=1 // pred_fallthru
      _
    // Predicated region
    $region18: #{tpu_custom_call.1} parent=1 // pred_check
      _
    $region19: #{tpu_custom_call.1} parent=1 // pred_check_branch
      %47 = sbr.rel (0) target = $region21
    $region20: #{tpu_custom_call.1} parent=1 // pred_region
      _
    $region21: #{tpu_custom_call.1} parent=1 // pred_fallthru
      _
    // Predicated region
    $region22: #{tpu_custom_call.1} parent=1 // pred_check
      _
    $region23: #{tpu_custom_call.1} parent=1 // pred_check_branch
      %49 = sbr.rel (0) target = $region25
    $region24: #{tpu_custom_call.1} parent=1 // pred_region
      %51 = vsyncadd [#allocation6], 0
      %s52 = sshll.u32 %s5, 4
      %s53 = int_to_ptr.hbm [resolvable:$true] %s52
      %s54 = sshll.u32 [#allocation7], 4
      %s55 = int_to_ptr.vmem [resolvable:$true] %s54
      %60 = dma.hbm_to_vmem [thread:$0]  %s53, 512, %s55, [#allocation6], 128, 128, 8
    $region25: #{tpu_custom_call.1} parent=1 // pred_fallthru
      _
    // Predicated region
    $region26: #{tpu_custom_call.1} parent=1 // pred_check
      _
    $region27: #{tpu_custom_call.1} parent=1 // pred_check_branch
      %62 = sbr.rel (0) target = $region29
    $region28: #{tpu_custom_call.1} parent=1 // pred_region
      %64 = vsyncadd [#allocation9], 0
      %s65 = sshll.u32 %s6, 4
      %s66 = int_to_ptr.hbm [resolvable:$true] %s65
      %s67 = sshll.u32 [#allocation8], 4
      %s68 = int_to_ptr.vmem [resolvable:$true] %s67
      %73 = dma.hbm_to_vmem [thread:$0]  %s66, 512, %s68, [#allocation9], 128, 128, 8
    $region29: #{tpu_custom_call.1} parent=1 // pred_fallthru
      _
    // Predicated region
    $region30: #{tpu_custom_call.1} parent=1 // pred_check
      _
    $region31: #{tpu_custom_call.1} parent=1 // pred_check_branch
      %75 = sbr.rel (0) target = $region33
    $region32: #{tpu_custom_call.1} parent=1 // pred_region
      _
    $region33: #{tpu_custom_call.1} parent=1 // pred_fallthru
      _
    // Predicated region
    $region34: #{tpu_custom_call.1} parent=1 // pred_check
      _
    $region35: #{tpu_custom_call.1} parent=1 // pred_check_branch
      %77 = sbr.rel (0) target = $region37
    $region36: #{tpu_custom_call.1} parent=1 // pred_region
      _
    $region37: #{tpu_custom_call.1} parent=1 // pred_fallthru
      _
    // Predicated region
    $region38: #{tpu_custom_call.1} parent=1 // pred_check
      _
    $region39: #{tpu_custom_call.1} parent=1 // pred_check_branch
      %79 = sbr.rel (0) target = $region41
    $region40: #{tpu_custom_call.1} parent=1 // pred_region
      %81 = dma.done [#allocation3], 256
    $region41: #{tpu_custom_call.1} parent=1 // pred_fallthru
      _
    // Predicated region
    $region42: #{tpu_custom_call.1} parent=1 // pred_check
      _
    $region43: #{tpu_custom_call.1} parent=1 // pred_check_branch
      %83 = sbr.rel (0) target = $region45
    $region44: #{tpu_custom_call.1} parent=1 // pred_region
      %85 = dma.done [#allocation6], 128
    $region45: #{tpu_custom_call.1} parent=1 // pred_fallthru
      _
    // Predicated region
    $region46: #{tpu_custom_call.1} parent=1 // pred_check
      _
    $region47: #{tpu_custom_call.1} parent=1 // pred_check_branch
      %87 = sbr.rel (0) target = $region49
    $region48: #{tpu_custom_call.1} parent=1 // pred_region
      %89 = dma.done [#allocation6], 512
    $region49: #{tpu_custom_call.1} parent=1 // pred_fallthru
      _
    // Predicated region
    $region50: #{tpu_custom_call.1} parent=1 // pred_check
      _
    $region51: #{tpu_custom_call.1} parent=1 // pred_check_branch
      %91 = sbr.rel (0) target = $region53
    $region52: #{tpu_custom_call.1} parent=1 // pred_region
      %93 = dma.done [#allocation9], 512
    $region53: #{tpu_custom_call.1} parent=1 // pred_fallthru
      _
    %v94 = vld [vmem:[%s0] sm:$0xff]
    %v95 = vld [vmem:[%s0 + $0x8] sm:$0xff]
    %v96 = vld [vmem:[%s0 + $0x10] sm:$0xff]
    %v97 = vld [vmem:[%s0 + $0x18] sm:$0xff]
    %v98 = vld [vmem:[#allocation2] sm:$0xff]
    %v99 = vld [vmem:[#allocation2 + $0x8] sm:$0xff]
    %v100 = vld [vmem:[#allocation5] sm:$0x1]
    %v101 = vld [vmem:[#allocation5 + $0x1] sm:$0x1]
    %v102 = vld [vmem:[#allocation5 + $0x2] sm:$0x1]
    %v103 = vld [vmem:[#allocation5 + $0x3] sm:$0x1]
    %v104 = vld [vmem:[#allocation5 + $0x4] sm:$0x1]
    %v105 = vld [vmem:[#allocation5 + $0x5] sm:$0x1]
    %106 = vxpose.xlu0.b32.start [1/16] %v98, 128
    %107 = vxpose.xlu0.b32.cont [2/16] 0.0, 128
    %108 = vxpose.xlu0.b32.cont [3/16] 0.0, 128
    %109 = vxpose.xlu0.b32.cont [4/16] 0.0, 128
    %110 = vxpose.xlu0.b32.cont [5/16] 0.0, 128
    %111 = vxpose.xlu0.b32.cont [6/16] 0.0, 128
    %112 = vxpose.xlu0.b32.cont [7/16] 0.0, 128
    %113 = vxpose.xlu0.b32.cont [8/16] 0.0, 128
    %114 = vxpose.xlu0.b32.cont [9/16] 0.0, 128
    %115 = vxpose.xlu0.b32.cont [10/16] 0.0, 128
    %116 = vxpose.xlu0.b32.cont [11/16] 0.0, 128
    %117 = vxpose.xlu0.b32.cont [12/16] 0.0, 128
    %118 = vxpose.xlu0.b32.cont [13/16] 0.0, 128
    %119 = vxpose.xlu0.b32.cont [14/16] 0.0, 128
    %120 = vxpose.xlu0.b32.cont [15/16] 0.0, 128
    %121 = vxpose.xlu0.b32.end [16/16] 0.0, 128
    %v122 = vpop.trf.xlu0
    %v123 = vpop.trf.xlu0
    %v124 = vpop.trf.xlu0
    %v125 = vpop.trf.xlu0
    %v126 = vpop.trf.xlu0
    %v127 = vpop.trf.xlu0
    %v128 = vpop.trf.xlu0
    %v129 = vpop.trf.xlu0
    %v130 = vpop.trf.xlu0
    %v131 = vpop.trf.xlu0
    %v132 = vpop.trf.xlu0
    %v133 = vpop.trf.xlu0
    %v134 = vpop.trf.xlu0
    %v135 = vpop.trf.xlu0
    %v136 = vpop.trf.xlu0
    %v137 = vpop.trf.xlu0
    %138 = vxpose.xlu0.b32.start [1/16] %v99, 128
    %139 = vxpose.xlu0.b32.cont [2/16] 0.0, 128
    %140 = vxpose.xlu0.b32.cont [3/16] 0.0, 128
    %141 = vxpose.xlu0.b32.cont [4/16] 0.0, 128
    %142 = vxpose.xlu0.b32.cont [5/16] 0.0, 128
    %143 = vxpose.xlu0.b32.cont [6/16] 0.0, 128
    %144 = vxpose.xlu0.b32.cont [7/16] 0.0, 128
    %145 = vxpose.xlu0.b32.cont [8/16] 0.0, 128
    %146 = vxpose.xlu0.b32.cont [9/16] 0.0, 128
    %147 = vxpose.xlu0.b32.cont [10/16] 0.0, 128
    %148 = vxpose.xlu0.b32.cont [11/16] 0.0, 128
    %149 = vxpose.xlu0.b32.cont [12/16] 0.0, 128
    %150 = vxpose.xlu0.b32.cont [13/16] 0.0, 128
    %151 = vxpose.xlu0.b32.cont [14/16] 0.0, 128
    %152 = vxpose.xlu0.b32.cont [15/16] 0.0, 128
    %153 = vxpose.xlu0.b32.end [16/16] 0.0, 128
    %v154 = vpop.trf.xlu0
    %v155 = vpop.trf.xlu0
    %v156 = vpop.trf.xlu0
    %v157 = vpop.trf.xlu0
    %v158 = vpop.trf.xlu0
    %v159 = vpop.trf.xlu0
    %v160 = vpop.trf.xlu0
    %v161 = vpop.trf.xlu0
    %v162 = vpop.trf.xlu0
    %v163 = vpop.trf.xlu0
    %v164 = vpop.trf.xlu0
    %v165 = vpop.trf.xlu0
    %v166 = vpop.trf.xlu0
    %v167 = vpop.trf.xlu0
    %v168 = vpop.trf.xlu0
    %v169 = vpop.trf.xlu0
    %vm170 = vcmp.ne.f32.partialorder %v122, 0.0
    %vm171 = vcmp.ne.f32.partialorder %v154, 0.0
    %v172 = vsel %vm170, 0.0, -1e+30
    %v173 = vsel %vm171, 0.0, -1e+30
    %vm174 = vcmask 261120
    %v175 = vsel %vm174, %v94, 0.0
    %176 = vadd.xlane.f32.xlu0 %v175
    %v177 = vpop.xlane.xlu0 %176
    %v178 = vsel %vm174, %v95, 0.0
    %179 = vadd.xlane.f32.xlu0 %v178
    %v180 = vpop.xlane.xlu0 %179
    %v181 = vsel %vm174, %v96, 0.0
    %182 = vadd.xlane.f32.xlu0 %v181
    %v183 = vpop.xlane.xlu0 %182
    %v184 = vsel %vm174, %v97, 0.0
    %185 = vadd.xlane.f32.xlu0 %v184
    %v186 = vpop.xlane.xlu0 %185
    %v187 = vrcp.pop 32.0
    %v188 = vmul.f32 32.0, %v187
    %v189 = vsub.f32 1.0, %v188
    %v190 = vmul.f32 %v187, %v189
    %v191 = vadd.f32 %v187, %v190
    %vm192 = vweird.f32 %v187
    %v193 = vsel %vm192, %v187, %v191
    %v194 = vmul.f32 %v177, %v193
    %v195 = vmul.f32 %v180, %v193
    %v196 = vmul.f32 %v183, %v193
    %v197 = vmul.f32 %v186, %v193
    %v198 = vsub.f32 %v94, %v194
    %v199 = vsub.f32 %v95, %v195
    %v200 = vsub.f32 %v96, %v196
    %v201 = vsub.f32 %v97, %v197
    %v202 = vmul.f32 %v198, %v198
    %v203 = vmul.f32 %v199, %v199
    %v204 = vmul.f32 %v200, %v200
    %v205 = vmul.f32 %v201, %v201
    %v206 = vsel %vm174, %v202, 0.0
    %207 = vadd.xlane.f32.xlu0 %v206
    %v208 = vpop.xlane.xlu0 %207
    %v209 = vsel %vm174, %v203, 0.0
    %210 = vadd.xlane.f32.xlu0 %v209
    %v211 = vpop.xlane.xlu0 %210
    %v212 = vsel %vm174, %v204, 0.0
    %213 = vadd.xlane.f32.xlu0 %v212
    %v214 = vpop.xlane.xlu0 %213
    %v215 = vsel %vm174, %v205, 0.0
    %216 = vadd.xlane.f32.xlu0 %v215
    %v217 = vpop.xlane.xlu0 %216
    %v218 = vmul.f32 %v208, %v193
    %v219 = vmul.f32 %v211, %v193
    %v220 = vmul.f32 %v214, %v193
    %v221 = vmul.f32 %v217, %v193
    %v222 = vadd.f32 %v218, 1e-05
    %v223 = vadd.f32 %v219, 1e-05
    %v224 = vadd.f32 %v220, 1e-05
    %v225 = vadd.f32 %v221, 1e-05
    %v226 = vrsqrt.pop %v222
    %v227 = vmul.f32 %v226, %v222
    %v228 = vmul.f32 %v227, %v226
    %v229 = vmul.f32 0.5, %v228
    %v230 = vsub.f32 1.5, %v229
    %v231 = vmul.f32 %v226, %v230
    %vm232 = vweird.f32 %v222
    %vm233 = vweird.f32 %v226
    %vm234 = vmor %vm232, %vm233
    %v235 = vsel %vm234, %v226, %v231
    %v236 = vrsqrt.pop %v223
    %v237 = vmul.f32 %v236, %v223
    %v238 = vmul.f32 %v237, %v236
    %v239 = vmul.f32 0.5, %v238
    %v240 = vsub.f32 1.5, %v239
    %v241 = vmul.f32 %v236, %v240
    %vm242 = vweird.f32 %v223
    %vm243 = vweird.f32 %v236
    %vm244 = vmor %vm242, %vm243
    %v245 = vsel %vm244, %v236, %v241
    %v246 = vrsqrt.pop %v224
    %v247 = vmul.f32 %v246, %v224
    %v248 = vmul.f32 %v247, %v246
    %v249 = vmul.f32 0.5, %v248
    %v250 = vsub.f32 1.5, %v249
    %v251 = vmul.f32 %v246, %v250
    %vm252 = vweird.f32 %v224
    %vm253 = vweird.f32 %v246
    %vm254 = vmor %vm252, %vm253
    %v255 = vsel %vm254, %v246, %v251
    %v256 = vrsqrt.pop %v225
    %v257 = vmul.f32 %v256, %v225
    %v258 = vmul.f32 %v257, %v256
    %v259 = vmul.f32 0.5, %v258
    %v260 = vsub.f32 1.5, %v259
    %v261 = vmul.f32 %v256, %v260
    %vm262 = vweird.f32 %v225
    %vm263 = vweird.f32 %v256
    %vm264 = vmor %vm262, %vm263
    %v265 = vsel %vm264, %v256, %v261
    %v266 = vmul.f32 %v198, %v235
    %v267 = vmul.f32 %v199, %v245
    %v268 = vmul.f32 %v200, %v255
    %v269 = vmul.f32 %v201, %v265
    %v270 = vperm.slane %v100, 0
    %v271 = vmul.f32 %v266, %v270
    %v272 = vmul.f32 %v267, %v270
    %v273 = vmul.f32 %v268, %v270
    %v274 = vmul.f32 %v269, %v270
    %v275 = vperm.slane %v101, 0
    %v276 = vadd.f32 %v271, %v275
    %v277 = vadd.f32 %v272, %v275
    %v278 = vadd.f32 %v273, %v275
    %v279 = vadd.f32 %v274, %v275
    %v280 = vsel %vm174, %v98, 0.0
    %281 = vadd.xlane.f32.xlu0 %v280
    %v282 = vpop.xlane.xlu0 %281
    %v283 = vsel %vm174, %v99, 0.0
    %284 = vadd.xlane.f32.xlu0 %v283
    %v285 = vpop.xlane.xlu0 %284
    %v286 = vmul.f32 %v282, %v193
    %v287 = vmul.f32 %v285, %v193
    %v288 = vsub.f32 %v98, %v286
    %v289 = vsub.f32 %v99, %v287
    %v290 = vmul.f32 %v288, %v288
    %v291 = vmul.f32 %v289, %v289
    %v292 = vsel %vm174, %v290, 0.0
    %293 = vadd.xlane.f32.xlu0 %v292
    %v294 = vpop.xlane.xlu0 %293
    %v295 = vsel %vm174, %v291, 0.0
    %296 = vadd.xlane.f32.xlu0 %v295
    %v297 = vpop.xlane.xlu0 %296
    %v298 = vmul.f32 %v294, %v193
    %v299 = vmul.f32 %v297, %v193
    %v300 = vadd.f32 %v298, 1e-05
    %v301 = vadd.f32 %v299, 1e-05
    %v302 = vrsqrt.pop %v300
    %v303 = vmul.f32 %v302, %v300
    %v304 = vmul.f32 %v303, %v302
    %v305 = vmul.f32 0.5, %v304
    %v306 = vsub.f32 1.5, %v305
    %v307 = vmul.f32 %v302, %v306
    %vm308 = vweird.f32 %v300
    %vm309 = vweird.f32 %v302
    %vm310 = vmor %vm308, %vm309
    %v311 = vsel %vm310, %v302, %v307
    %v312 = vrsqrt.pop %v301
    %v313 = vmul.f32 %v312, %v301
    %v314 = vmul.f32 %v313, %v312
    %v315 = vmul.f32 0.5, %v314
    %v316 = vsub.f32 1.5, %v315
    %v317 = vmul.f32 %v312, %v316
    %vm318 = vweird.f32 %v301
    %vm319 = vweird.f32 %v312
    %vm320 = vmor %vm318, %vm319
    %v321 = vsel %vm320, %v312, %v317
    %v322 = vmul.f32 %v288, %v311
    %v323 = vmul.f32 %v289, %v321
    %v324 = vperm.slane %v102, 0
    %v325 = vmul.f32 %v322, %v324
    %v326 = vmul.f32 %v323, %v324
    %v327 = vperm.slane %v103, 0
    %v328 = vadd.f32 %v325, %v327
    %v329 = vadd.f32 %v326, %v327
    %v330 = vld [vmem:[%s3] sm:$0xff]
    %v331 = vld [vmem:[%s3 + $0x8] sm:$0xff]
    %v332 = vld [vmem:[%s3 + $0x10] sm:$0xff]
    %v333 = vld [vmem:[%s3 + $0x18] sm:$0xff]
    %v335 = vsel %vm174, %v276, 0
    %v338 = vsel %vm174, %v277, 0
    %v341 = vsel %vm174, %v278, 0
    %v344 = vsel %vm174, %v279, 0
    %346 = vmatpush.msra.mxu0 0.0
    %347 = vmatpush.msra.mxu0 0.0
    %348 = vmatpush.msra.mxu0 0.0
    %349 = vmatpush.msra.mxu0 0.0
    %350 = vmatpush.msra.mxu0 0.0
    %351 = vmatpush.msra.mxu0 0.0
    %352 = vmatpush.msra.mxu0 0.0
    %353 = vmatpush.msra.mxu0 0.0
    %354 = vmatpush.msra.mxu0 0.0
    %355 = vmatpush.msra.mxu0 0.0
    %356 = vmatpush.msra.mxu0 0.0
    %357 = vmatpush.msra.mxu0 0.0
    %358 = vmatpush.msra.mxu0 %v333
    %359 = vmatpush.msra.mxu0 %v332
    %360 = vmatpush.msra.mxu0 %v331
    %361 = vmatpush.msra.mxu0 %v330
    %362 = vmatmul.f32.gmra.mxu0 %v335
    %v363 = vpop.f32.mrf.mxu0
    %v364 = vadd.f32 0.0, %v363
    %365 = vmatmul.f32.gmra.mxu0 %v338
    %v366 = vpop.f32.mrf.mxu0
    %v367 = vadd.f32 0.0, %v366
    %368 = vmatmul.f32.gmra.mxu0 %v341
    %v369 = vpop.f32.mrf.mxu0
    %v370 = vadd.f32 0.0, %v369
    %371 = vmatmul.f32.gmra.mxu0 %v344
    %v372 = vpop.f32.mrf.mxu0
    %v373 = vadd.f32 0.0, %v372
    %374 = vdwg.mxu0
    %v375 = vld [vmem:[%s4] sm:$0xff]
    %v376 = vld [vmem:[%s4 + $0x8] sm:$0xff]
    %v377 = vld [vmem:[%s4 + $0x10] sm:$0xff]
    %v378 = vld [vmem:[%s4 + $0x18] sm:$0xff]
    %v380 = vsel %vm174, %v98, 0
    %v383 = vsel %vm174, %v99, 0
    %385 = vmatpush.msra.mxu0 0.0
    %386 = vmatpush.msra.mxu0 0.0
    %387 = vmatpush.msra.mxu0 0.0
    %388 = vmatpush.msra.mxu0 0.0
    %389 = vmatpush.msra.mxu0 0.0
    %390 = vmatpush.msra.mxu0 0.0
    %391 = vmatpush.msra.mxu0 0.0
    %392 = vmatpush.msra.mxu0 0.0
    %393 = vmatpush.msra.mxu0 0.0
    %394 = vmatpush.msra.mxu0 0.0
    %395 = vmatpush.msra.mxu0 0.0
    %396 = vmatpush.msra.mxu0 0.0
    %397 = vmatpush.msra.mxu0 %v378
    %398 = vmatpush.msra.mxu0 %v377
    %399 = vmatpush.msra.mxu0 %v376
    %400 = vmatpush.msra.mxu0 %v375
    %401 = vmatmul.f32.gmra.mxu0 %v380
    %v402 = vpop.f32.mrf.mxu0
    %v403 = vadd.f32 0.0, %v402
    %404 = vmatmul.f32.gmra.mxu0 %v383
    %v405 = vpop.f32.mrf.mxu0
    %v406 = vadd.f32 0.0, %v405
    %407 = vdwg.mxu0
    %v408 = vld [vmem:[#allocation7] sm:$0xff]
    %v409 = vld [vmem:[#allocation7 + $0x8] sm:$0xff]
    %v410 = vld [vmem:[#allocation7 + $0x10] sm:$0xff]
    %v411 = vld [vmem:[#allocation7 + $0x18] sm:$0xff]
    %v413 = vsel %vm174, %v328, 0
    %v416 = vsel %vm174, %v329, 0
    %418 = vmatpush.msra.mxu0 0.0
    %419 = vmatpush.msra.mxu0 0.0
    %420 = vmatpush.msra.mxu0 0.0
    %421 = vmatpush.msra.mxu0 0.0
    %422 = vmatpush.msra.mxu0 0.0
    %423 = vmatpush.msra.mxu0 0.0
    %424 = vmatpush.msra.mxu0 0.0
    %425 = vmatpush.msra.mxu0 0.0
    %426 = vmatpush.msra.mxu0 0.0
    %427 = vmatpush.msra.mxu0 0.0
    %428 = vmatpush.msra.mxu0 0.0
    %429 = vmatpush.msra.mxu0 0.0
    %430 = vmatpush.msra.mxu0 %v411
    %431 = vmatpush.msra.mxu0 %v410
    %432 = vmatpush.msra.mxu0 %v409
    %433 = vmatpush.msra.mxu0 %v408
    %434 = vmatmul.f32.gmra.mxu0 %v413
    %v435 = vpop.f32.mrf.mxu0
    %v436 = vadd.f32 0.0, %v435
    %437 = vmatmul.f32.gmra.mxu0 %v416
    %v438 = vpop.f32.mrf.mxu0
    %v439 = vadd.f32 0.0, %v438
    %440 = vdwg.mxu0
    %v441 = vld [vmem:[#allocation8] sm:$0xff]
    %v442 = vld [vmem:[#allocation8 + $0x8] sm:$0xff]
    %v443 = vld [vmem:[#allocation8 + $0x10] sm:$0xff]
    %v444 = vld [vmem:[#allocation8 + $0x18] sm:$0xff]
    %v446 = vsel %vm174, %v94, 0
    %v449 = vsel %vm174, %v95, 0
    %v452 = vsel %vm174, %v96, 0
    %v455 = vsel %vm174, %v97, 0
    %457 = vmatpush.msra.mxu0 0.0
    %458 = vmatpush.msra.mxu0 0.0
    %459 = vmatpush.msra.mxu0 0.0
    %460 = vmatpush.msra.mxu0 0.0
    %461 = vmatpush.msra.mxu0 0.0
    %462 = vmatpush.msra.mxu0 0.0
    %463 = vmatpush.msra.mxu0 0.0
    %464 = vmatpush.msra.mxu0 0.0
    %465 = vmatpush.msra.mxu0 0.0
    %466 = vmatpush.msra.mxu0 0.0
    %467 = vmatpush.msra.mxu0 0.0
    %468 = vmatpush.msra.mxu0 0.0
    %469 = vmatpush.msra.mxu0 %v444
    %470 = vmatpush.msra.mxu0 %v443
    %471 = vmatpush.msra.mxu0 %v442
    %472 = vmatpush.msra.mxu0 %v441
    %473 = vmatmul.f32.gmra.mxu0 %v446
    %v474 = vpop.f32.mrf.mxu0
    %v475 = vadd.f32 0.0, %v474
    %476 = vmatmul.f32.gmra.mxu0 %v449
    %v477 = vpop.f32.mrf.mxu0
    %v478 = vadd.f32 0.0, %v477
    %479 = vmatmul.f32.gmra.mxu0 %v452
    %v480 = vpop.f32.mrf.mxu0
    %v481 = vadd.f32 0.0, %v480
    %482 = vmatmul.f32.gmra.mxu0 %v455
    %v483 = vpop.f32.mrf.mxu0
    %v484 = vadd.f32 0.0, %v483
    %485 = vdwg.mxu0
    %vm486 = vcmask 64512
    %v488 = vsel %vm486, %v364, 0
    %v491 = vsel %vm486, %v367, 0
    %v494 = vsel %vm486, %v403, 0
    %496 = vmatpush.xpose.msra.mxu0 0.0
    %497 = vmatpush.xpose.msra.mxu0 0.0
    %498 = vmatpush.xpose.msra.mxu0 0.0
    %499 = vmatpush.xpose.msra.mxu0 0.0
    %500 = vmatpush.xpose.msra.mxu0 0.0
    %501 = vmatpush.xpose.msra.mxu0 0.0
    %502 = vmatpush.xpose.msra.mxu0 0.0
    %503 = vmatpush.xpose.msra.mxu0 0.0
    %504 = vmatpush.xpose.msra.mxu0 0.0
    %505 = vmatpush.xpose.msra.mxu0 0.0
    %506 = vmatpush.xpose.msra.mxu0 0.0
    %507 = vmatpush.xpose.msra.mxu0 0.0
    %508 = vmatpush.xpose.msra.mxu0 0.0
    %509 = vmatpush.xpose.msra.mxu0 0.0
    %510 = vmatpush.xpose.msra.mxu0 0.0
    %511 = vmatpush.xpose.msra.mxu0 %v494
    %512 = vmatmul.f32.gmra.mxu0 %v488
    %v513 = vpop.f32.mrf.mxu0
    %v514 = vadd.f32 0.0, %v513
    %515 = vmatmul.f32.gmra.mxu0 %v491
    %v516 = vpop.f32.mrf.mxu0
    %v517 = vadd.f32 0.0, %v516
    %518 = vdwg.mxu0
    %v520 = vsel %vm486, %v370, 0
    %v523 = vsel %vm486, %v373, 0
    %v526 = vsel %vm486, %v406, 0
    %528 = vmatpush.xpose.msra.mxu0 0.0
    %529 = vmatpush.xpose.msra.mxu0 0.0
    %530 = vmatpush.xpose.msra.mxu0 0.0
    %531 = vmatpush.xpose.msra.mxu0 0.0
    %532 = vmatpush.xpose.msra.mxu0 0.0
    %533 = vmatpush.xpose.msra.mxu0 0.0
    %534 = vmatpush.xpose.msra.mxu0 0.0
    %535 = vmatpush.xpose.msra.mxu0 0.0
    %536 = vmatpush.xpose.msra.mxu0 0.0
    %537 = vmatpush.xpose.msra.mxu0 0.0
    %538 = vmatpush.xpose.msra.mxu0 0.0
    %539 = vmatpush.xpose.msra.mxu0 0.0
    %540 = vmatpush.xpose.msra.mxu0 0.0
    %541 = vmatpush.xpose.msra.mxu0 0.0
    %542 = vmatpush.xpose.msra.mxu0 0.0
    %543 = vmatpush.xpose.msra.mxu0 %v526
    %544 = vmatmul.f32.gmra.mxu0 %v520
    %v545 = vpop.f32.mrf.mxu0
    %v546 = vadd.f32 0.0, %v545
    %547 = vmatmul.f32.gmra.mxu0 %v523
    %v548 = vpop.f32.mrf.mxu0
    %v549 = vadd.f32 0.0, %v548
    %550 = vdwg.mxu0
    %551 = vrot.lane.b32.xlu0 %v364, 120
    %v552 = vpop.permute.xlu0 %551
    %553 = vrot.lane.b32.xlu0 %v367, 120
    %v554 = vpop.permute.xlu0 %553
    %555 = vrot.lane.b32.xlu0 %v403, 120
    %v556 = vpop.permute.xlu0 %555
    %v557 = vsel %vm486, %v552, 0
    %v559 = vsel %vm486, %v554, 0
    %v561 = vsel %vm486, %v556, 0
    %563 = vmatpush.xpose.msra.mxu0 0.0
    %564 = vmatpush.xpose.msra.mxu0 0.0
    %565 = vmatpush.xpose.msra.mxu0 0.0
    %566 = vmatpush.xpose.msra.mxu0 0.0
    %567 = vmatpush.xpose.msra.mxu0 0.0
    %568 = vmatpush.xpose.msra.mxu0 0.0
    %569 = vmatpush.xpose.msra.mxu0 0.0
    %570 = vmatpush.xpose.msra.mxu0 0.0
    %571 = vmatpush.xpose.msra.mxu0 0.0
    %572 = vmatpush.xpose.msra.mxu0 0.0
    %573 = vmatpush.xpose.msra.mxu0 0.0
    %574 = vmatpush.xpose.msra.mxu0 0.0
    %575 = vmatpush.xpose.msra.mxu0 0.0
    %576 = vmatpush.xpose.msra.mxu0 0.0
    %577 = vmatpush.xpose.msra.mxu0 0.0
    %578 = vmatpush.xpose.msra.mxu0 %v561
    %579 = vmatmul.f32.gmra.mxu0 %v557
    %v580 = vpop.f32.mrf.mxu0
    %v581 = vadd.f32 0.0, %v580
    %582 = vmatmul.f32.gmra.mxu0 %v559
    %v583 = vpop.f32.mrf.mxu0
    %v584 = vadd.f32 0.0, %v583
    %585 = vdwg.mxu0
    %586 = vrot.lane.b32.xlu0 %v370, 120
    %v587 = vpop.permute.xlu0 %586
    %588 = vrot.lane.b32.xlu0 %v373, 120
    %v589 = vpop.permute.xlu0 %588
    %590 = vrot.lane.b32.xlu0 %v406, 120
    %v591 = vpop.permute.xlu0 %590
    %v592 = vsel %vm486, %v587, 0
    %v594 = vsel %vm486, %v589, 0
    %v596 = vsel %vm486, %v591, 0
    %598 = vmatpush.xpose.msra.mxu0 0.0
    %599 = vmatpush.xpose.msra.mxu0 0.0
    %600 = vmatpush.xpose.msra.mxu0 0.0
    %601 = vmatpush.xpose.msra.mxu0 0.0
    %602 = vmatpush.xpose.msra.mxu0 0.0
    %603 = vmatpush.xpose.msra.mxu0 0.0
    %604 = vmatpush.xpose.msra.mxu0 0.0
    %605 = vmatpush.xpose.msra.mxu0 0.0
    %606 = vmatpush.xpose.msra.mxu0 0.0
    %607 = vmatpush.xpose.msra.mxu0 0.0
    %608 = vmatpush.xpose.msra.mxu0 0.0
    %609 = vmatpush.xpose.msra.mxu0 0.0
    %610 = vmatpush.xpose.msra.mxu0 0.0
    %611 = vmatpush.xpose.msra.mxu0 0.0
    %612 = vmatpush.xpose.msra.mxu0 0.0
    %613 = vmatpush.xpose.msra.mxu0 %v596
    %614 = vmatmul.f32.gmra.mxu0 %v592
    %v615 = vpop.f32.mrf.mxu0
    %v616 = vadd.f32 0.0, %v615
    %617 = vmatmul.f32.gmra.mxu0 %v594
    %v618 = vpop.f32.mrf.mxu0
    %v619 = vadd.f32 0.0, %v618
    %620 = vdwg.mxu0
    %621 = vrot.lane.b32.xlu0 %v364, 112
    %v622 = vpop.permute.xlu0 %621
    %623 = vrot.lane.b32.xlu0 %v367, 112
    %v624 = vpop.permute.xlu0 %623
    %625 = vrot.lane.b32.xlu0 %v403, 112
    %v626 = vpop.permute.xlu0 %625
    %v627 = vsel %vm486, %v622, 0
    %v629 = vsel %vm486, %v624, 0
    %v631 = vsel %vm486, %v626, 0
    %633 = vmatpush.xpose.msra.mxu0 0.0
    %634 = vmatpush.xpose.msra.mxu0 0.0
    %635 = vmatpush.xpose.msra.mxu0 0.0
    %636 = vmatpush.xpose.msra.mxu0 0.0
    %637 = vmatpush.xpose.msra.mxu0 0.0
    %638 = vmatpush.xpose.msra.mxu0 0.0
    %639 = vmatpush.xpose.msra.mxu0 0.0
    %640 = vmatpush.xpose.msra.mxu0 0.0
    %641 = vmatpush.xpose.msra.mxu0 0.0
    %642 = vmatpush.xpose.msra.mxu0 0.0
    %643 = vmatpush.xpose.msra.mxu0 0.0
    %644 = vmatpush.xpose.msra.mxu0 0.0
    %645 = vmatpush.xpose.msra.mxu0 0.0
    %646 = vmatpush.xpose.msra.mxu0 0.0
    %647 = vmatpush.xpose.msra.mxu0 0.0
    %648 = vmatpush.xpose.msra.mxu0 %v631
    %649 = vmatmul.f32.gmra.mxu0 %v627
    %v650 = vpop.f32.mrf.mxu0
    %v651 = vadd.f32 0.0, %v650
    %652 = vmatmul.f32.gmra.mxu0 %v629
    %v653 = vpop.f32.mrf.mxu0
    %v654 = vadd.f32 0.0, %v653
    %655 = vdwg.mxu0
    %656 = vrot.lane.b32.xlu0 %v370, 112
    %v657 = vpop.permute.xlu0 %656
    %658 = vrot.lane.b32.xlu0 %v373, 112
    %v659 = vpop.permute.xlu0 %658
    %660 = vrot.lane.b32.xlu0 %v406, 112
    %v661 = vpop.permute.xlu0 %660
    %v662 = vsel %vm486, %v657, 0
    %v664 = vsel %vm486, %v659, 0
    %v666 = vsel %vm486, %v661, 0
    %668 = vmatpush.xpose.msra.mxu0 0.0
    %669 = vmatpush.xpose.msra.mxu0 0.0
    %670 = vmatpush.xpose.msra.mxu0 0.0
    %671 = vmatpush.xpose.msra.mxu0 0.0
    %672 = vmatpush.xpose.msra.mxu0 0.0
    %673 = vmatpush.xpose.msra.mxu0 0.0
    %674 = vmatpush.xpose.msra.mxu0 0.0
    %675 = vmatpush.xpose.msra.mxu0 0.0
    %676 = vmatpush.xpose.msra.mxu0 0.0
    %677 = vmatpush.xpose.msra.mxu0 0.0
    %678 = vmatpush.xpose.msra.mxu0 0.0
    %679 = vmatpush.xpose.msra.mxu0 0.0
    %680 = vmatpush.xpose.msra.mxu0 0.0
    %681 = vmatpush.xpose.msra.mxu0 0.0
    %682 = vmatpush.xpose.msra.mxu0 0.0
    %683 = vmatpush.xpose.msra.mxu0 %v666
    %684 = vmatmul.f32.gmra.mxu0 %v662
    %v685 = vpop.f32.mrf.mxu0
    %v686 = vadd.f32 0.0, %v685
    %687 = vmatmul.f32.gmra.mxu0 %v664
    %v688 = vpop.f32.mrf.mxu0
    %v689 = vadd.f32 0.0, %v688
    %690 = vdwg.mxu0
    %691 = vrot.lane.b32.xlu0 %v364, 104
    %v692 = vpop.permute.xlu0 %691
    %693 = vrot.lane.b32.xlu0 %v367, 104
    %v694 = vpop.permute.xlu0 %693
    %695 = vrot.lane.b32.xlu0 %v403, 104
    %v696 = vpop.permute.xlu0 %695
    %v697 = vsel %vm486, %v692, 0
    %v699 = vsel %vm486, %v694, 0
    %v701 = vsel %vm486, %v696, 0
    %703 = vmatpush.xpose.msra.mxu0 0.0
    %704 = vmatpush.xpose.msra.mxu0 0.0
    %705 = vmatpush.xpose.msra.mxu0 0.0
    %706 = vmatpush.xpose.msra.mxu0 0.0
    %707 = vmatpush.xpose.msra.mxu0 0.0
    %708 = vmatpush.xpose.msra.mxu0 0.0
    %709 = vmatpush.xpose.msra.mxu0 0.0
    %710 = vmatpush.xpose.msra.mxu0 0.0
    %711 = vmatpush.xpose.msra.mxu0 0.0
    %712 = vmatpush.xpose.msra.mxu0 0.0
    %713 = vmatpush.xpose.msra.mxu0 0.0
    %714 = vmatpush.xpose.msra.mxu0 0.0
    %715 = vmatpush.xpose.msra.mxu0 0.0
    %716 = vmatpush.xpose.msra.mxu0 0.0
    %717 = vmatpush.xpose.msra.mxu0 0.0
    %718 = vmatpush.xpose.msra.mxu0 %v701
    %719 = vmatmul.f32.gmra.mxu0 %v697
    %v720 = vpop.f32.mrf.mxu0
    %v721 = vadd.f32 0.0, %v720
    %722 = vmatmul.f32.gmra.mxu0 %v699
    %v723 = vpop.f32.mrf.mxu0
    %v724 = vadd.f32 0.0, %v723
    %725 = vdwg.mxu0
    %726 = vrot.lane.b32.xlu0 %v370, 104
    %v727 = vpop.permute.xlu0 %726
    %728 = vrot.lane.b32.xlu0 %v373, 104
    %v729 = vpop.permute.xlu0 %728
    %730 = vrot.lane.b32.xlu0 %v406, 104
    %v731 = vpop.permute.xlu0 %730
    %v732 = vsel %vm486, %v727, 0
    %v734 = vsel %vm486, %v729, 0
    %v736 = vsel %vm486, %v731, 0
    %738 = vmatpush.xpose.msra.mxu0 0.0
    %739 = vmatpush.xpose.msra.mxu0 0.0
    %740 = vmatpush.xpose.msra.mxu0 0.0
    %741 = vmatpush.xpose.msra.mxu0 0.0
    %742 = vmatpush.xpose.msra.mxu0 0.0
    %743 = vmatpush.xpose.msra.mxu0 0.0
    %744 = vmatpush.xpose.msra.mxu0 0.0
    %745 = vmatpush.xpose.msra.mxu0 0.0
    %746 = vmatpush.xpose.msra.mxu0 0.0
    %747 = vmatpush.xpose.msra.mxu0 0.0
    %748 = vmatpush.xpose.msra.mxu0 0.0
    %749 = vmatpush.xpose.msra.mxu0 0.0
    %750 = vmatpush.xpose.msra.mxu0 0.0
    %751 = vmatpush.xpose.msra.mxu0 0.0
    %752 = vmatpush.xpose.msra.mxu0 0.0
    %753 = vmatpush.xpose.msra.mxu0 %v736
    %754 = vmatmul.f32.gmra.mxu0 %v732
    %v755 = vpop.f32.mrf.mxu0
    %v756 = vadd.f32 0.0, %v755
    %757 = vmatmul.f32.gmra.mxu0 %v734
    %v758 = vpop.f32.mrf.mxu0
    %v759 = vadd.f32 0.0, %v758
    %760 = vdwg.mxu0
    %v761 = vperm.slane %v172, 0
    %v762 = vperm.slane %v173, 0
    %v763 = vadd.f32 %v514, %v761
    %v764 = vadd.f32 %v517, %v761
    %v765 = vadd.f32 %v581, %v761
    %v766 = vadd.f32 %v584, %v761
    %v767 = vadd.f32 %v651, %v761
    %v768 = vadd.f32 %v654, %v761
    %v769 = vadd.f32 %v721, %v761
    %v770 = vadd.f32 %v724, %v761
    %v771 = vadd.f32 %v546, %v762
    %v772 = vadd.f32 %v549, %v762
    %v773 = vadd.f32 %v616, %v762
    %v774 = vadd.f32 %v619, %v762
    %v775 = vadd.f32 %v686, %v762
    %v776 = vadd.f32 %v689, %v762
    %v777 = vadd.f32 %v756, %v762
    %v778 = vadd.f32 %v759, %v762
    %v779 = vsel %vm486, %v763, -inf
    %780 = vmax.xlane.f32.xlu0 %v779
    %v781 = vpop.xlane.xlu0 %780
    %v782 = vsel %vm486, %v764, -inf
    %783 = vmax.xlane.f32.xlu0 %v782
    %v784 = vpop.xlane.xlu0 %783
    %v785 = vsel %vm486, %v765, -inf
    %786 = vmax.xlane.f32.xlu0 %v785
    %v787 = vpop.xlane.xlu0 %786
    %v788 = vsel %vm486, %v766, -inf
    %789 = vmax.xlane.f32.xlu0 %v788
    %v790 = vpop.xlane.xlu0 %789
    %v791 = vsel %vm486, %v767, -inf
    %792 = vmax.xlane.f32.xlu0 %v791
    %v793 = vpop.xlane.xlu0 %792
    %v794 = vsel %vm486, %v768, -inf
    %795 = vmax.xlane.f32.xlu0 %v794
    %v796 = vpop.xlane.xlu0 %795
    %v797 = vsel %vm486, %v769, -inf
    %798 = vmax.xlane.f32.xlu0 %v797
    %v799 = vpop.xlane.xlu0 %798
    %v800 = vsel %vm486, %v770, -inf
    %801 = vmax.xlane.f32.xlu0 %v800
    %v802 = vpop.xlane.xlu0 %801
    %v803 = vsel %vm486, %v771, -inf
    %804 = vmax.xlane.f32.xlu0 %v803
    %v805 = vpop.xlane.xlu0 %804
    %v806 = vsel %vm486, %v772, -inf
    %807 = vmax.xlane.f32.xlu0 %v806
    %v808 = vpop.xlane.xlu0 %807
    %v809 = vsel %vm486, %v773, -inf
    %810 = vmax.xlane.f32.xlu0 %v809
    %v811 = vpop.xlane.xlu0 %810
    %v812 = vsel %vm486, %v774, -inf
    %813 = vmax.xlane.f32.xlu0 %v812
    %v814 = vpop.xlane.xlu0 %813
    %v815 = vsel %vm486, %v775, -inf
    %816 = vmax.xlane.f32.xlu0 %v815
    %v817 = vpop.xlane.xlu0 %816
    %v818 = vsel %vm486, %v776, -inf
    %819 = vmax.xlane.f32.xlu0 %v818
    %v820 = vpop.xlane.xlu0 %819
    %v821 = vsel %vm486, %v777, -inf
    %822 = vmax.xlane.f32.xlu0 %v821
    %v823 = vpop.xlane.xlu0 %822
    %v824 = vsel %vm486, %v778, -inf
    %825 = vmax.xlane.f32.xlu0 %v824
    %v826 = vpop.xlane.xlu0 %825
    %v827 = vsub.f32 %v763, %v781
    %v828 = vsub.f32 %v764, %v784
    %v829 = vsub.f32 %v765, %v787
    %v830 = vsub.f32 %v766, %v790
    %v831 = vsub.f32 %v767, %v793
    %v832 = vsub.f32 %v768, %v796
    %v833 = vsub.f32 %v769, %v799
    %v834 = vsub.f32 %v770, %v802
    %v835 = vsub.f32 %v771, %v805
    %v836 = vsub.f32 %v772, %v808
    %v837 = vsub.f32 %v773, %v811
    %v838 = vsub.f32 %v774, %v814
    %v839 = vsub.f32 %v775, %v817
    %v840 = vsub.f32 %v776, %v820
    %v841 = vsub.f32 %v777, %v823
    %v842 = vsub.f32 %v778, %v826
    %v843 = vmul.f32 %v827, 1.442695
    %v844 = vpow.pop %v843
    %v845 = vmul.f32 %v828, 1.442695
    %v846 = vpow.pop %v845
    %v847 = vmul.f32 %v829, 1.442695
    %v848 = vpow.pop %v847
    %v849 = vmul.f32 %v830, 1.442695
    %v850 = vpow.pop %v849
    %v851 = vmul.f32 %v831, 1.442695
    %v852 = vpow.pop %v851
    %v853 = vmul.f32 %v832, 1.442695
    %v854 = vpow.pop %v853
    %v855 = vmul.f32 %v833, 1.442695
    %v856 = vpow.pop %v855
    %v857 = vmul.f32 %v834, 1.442695
    %v858 = vpow.pop %v857
    %v859 = vmul.f32 %v835, 1.442695
    %v860 = vpow.pop %v859
    %v861 = vmul.f32 %v836, 1.442695
    %v862 = vpow.pop %v861
    %v863 = vmul.f32 %v837, 1.442695
    %v864 = vpow.pop %v863
    %v865 = vmul.f32 %v838, 1.442695
    %v866 = vpow.pop %v865
    %v867 = vmul.f32 %v839, 1.442695
    %v868 = vpow.pop %v867
    %v869 = vmul.f32 %v840, 1.442695
    %v870 = vpow.pop %v869
    %v871 = vmul.f32 %v841, 1.442695
    %v872 = vpow.pop %v871
    %v873 = vmul.f32 %v842, 1.442695
    %v874 = vpow.pop %v873
    %v875 = vsel %vm486, %v844, 0.0
    %876 = vadd.xlane.f32.xlu0 %v875
    %v877 = vpop.xlane.xlu0 %876
    %v878 = vsel %vm486, %v846, 0.0
    %879 = vadd.xlane.f32.xlu0 %v878
    %v880 = vpop.xlane.xlu0 %879
    %v881 = vsel %vm486, %v848, 0.0
    %882 = vadd.xlane.f32.xlu0 %v881
    %v883 = vpop.xlane.xlu0 %882
    %v884 = vsel %vm486, %v850, 0.0
    %885 = vadd.xlane.f32.xlu0 %v884
    %v886 = vpop.xlane.xlu0 %885
    %v887 = vsel %vm486, %v852, 0.0
    %888 = vadd.xlane.f32.xlu0 %v887
    %v889 = vpop.xlane.xlu0 %888
    %v890 = vsel %vm486, %v854, 0.0
    %891 = vadd.xlane.f32.xlu0 %v890
    %v892 = vpop.xlane.xlu0 %891
    %v893 = vsel %vm486, %v856, 0.0
    %894 = vadd.xlane.f32.xlu0 %v893
    %v895 = vpop.xlane.xlu0 %894
    %v896 = vsel %vm486, %v858, 0.0
    %897 = vadd.xlane.f32.xlu0 %v896
    %v898 = vpop.xlane.xlu0 %897
    %v899 = vsel %vm486, %v860, 0.0
    %900 = vadd.xlane.f32.xlu0 %v899
    %v901 = vpop.xlane.xlu0 %900
    %v902 = vsel %vm486, %v862, 0.0
    %903 = vadd.xlane.f32.xlu0 %v902
    %v904 = vpop.xlane.xlu0 %903
    %v905 = vsel %vm486, %v864, 0.0
    %906 = vadd.xlane.f32.xlu0 %v905
    %v907 = vpop.xlane.xlu0 %906
    %v908 = vsel %vm486, %v866, 0.0
    %909 = vadd.xlane.f32.xlu0 %v908
    %v910 = vpop.xlane.xlu0 %909
    %v911 = vsel %vm486, %v868, 0.0
    %912 = vadd.xlane.f32.xlu0 %v911
    %v913 = vpop.xlane.xlu0 %912
    %v914 = vsel %vm486, %v870, 0.0
    %915 = vadd.xlane.f32.xlu0 %v914
    %v916 = vpop.xlane.xlu0 %915
    %v917 = vsel %vm486, %v872, 0.0
    %918 = vadd.xlane.f32.xlu0 %v917
    %v919 = vpop.xlane.xlu0 %918
    %v920 = vsel %vm486, %v874, 0.0
    %921 = vadd.xlane.f32.xlu0 %v920
    %v922 = vpop.xlane.xlu0 %921
    %v923 = vrcp.pop %v877
    %v924 = vrcp.pop %v880
    %v925 = vrcp.pop %v883
    %v926 = vrcp.pop %v886
    %v927 = vrcp.pop %v889
    %v928 = vrcp.pop %v892
    %v929 = vrcp.pop %v895
    %v930 = vrcp.pop %v898
    %v931 = vrcp.pop %v901
    %v932 = vrcp.pop %v904
    %v933 = vrcp.pop %v907
    %v934 = vrcp.pop %v910
    %v935 = vrcp.pop %v913
    %v936 = vrcp.pop %v916
    %v937 = vrcp.pop %v919
    %v938 = vrcp.pop %v922
    %v939 = vmul.f32 %v844, %v923
    %v940 = vmul.f32 %v846, %v924
    %v941 = vmul.f32 %v848, %v925
    %v942 = vmul.f32 %v850, %v926
    %v943 = vmul.f32 %v852, %v927
    %v944 = vmul.f32 %v854, %v928
    %v945 = vmul.f32 %v856, %v929
    %v946 = vmul.f32 %v858, %v930
    %v947 = vmul.f32 %v860, %v931
    %v948 = vmul.f32 %v862, %v932
    %v949 = vmul.f32 %v864, %v933
    %v950 = vmul.f32 %v866, %v934
    %v951 = vmul.f32 %v868, %v935
    %v952 = vmul.f32 %v870, %v936
    %v953 = vmul.f32 %v872, %v937
    %v954 = vmul.f32 %v874, %v938
    %v955 = vsel %vm486, %v939, 0.0
    %v956 = vsel %vm486, %v940, 0.0
    %v957 = vadd.f32 %v955, %v956
    %v958 = vrot.slane %v957, 4
    %v959 = vadd.f32 %v957, %v958
    %v960 = vrot.slane %v959, 2
    %v961 = vadd.f32 %v959, %v960
    %v962 = vrot.slane %v961, 1
    %v963 = vadd.f32 %v961, %v962
    %v964 = vsel %vm486, %v941, 0.0
    %v965 = vsel %vm486, %v942, 0.0
    %v966 = vadd.f32 %v964, %v965
    %v967 = vrot.slane %v966, 4
    %v968 = vadd.f32 %v966, %v967
    %v969 = vrot.slane %v968, 2
    %v970 = vadd.f32 %v968, %v969
    %v971 = vrot.slane %v970, 1
    %v972 = vadd.f32 %v970, %v971
    %v973 = vsel %vm486, %v943, 0.0
    %v974 = vsel %vm486, %v944, 0.0
    %v975 = vadd.f32 %v973, %v974
    %v976 = vrot.slane %v975, 4
    %v977 = vadd.f32 %v975, %v976
    %v978 = vrot.slane %v977, 2
    %v979 = vadd.f32 %v977, %v978
    %v980 = vrot.slane %v979, 1
    %v981 = vadd.f32 %v979, %v980
    %v982 = vsel %vm486, %v945, 0.0
    %v983 = vsel %vm486, %v946, 0.0
    %v984 = vadd.f32 %v982, %v983
    %v985 = vrot.slane %v984, 4
    %v986 = vadd.f32 %v984, %v985
    %v987 = vrot.slane %v986, 2
    %v988 = vadd.f32 %v986, %v987
    %v989 = vrot.slane %v988, 1
    %v990 = vadd.f32 %v988, %v989
    %v991 = vsel %vm486, %v947, 0.0
    %v992 = vsel %vm486, %v948, 0.0
    %v993 = vadd.f32 %v991, %v992
    %v994 = vrot.slane %v993, 4
    %v995 = vadd.f32 %v993, %v994
    %v996 = vrot.slane %v995, 2
    %v997 = vadd.f32 %v995, %v996
    %v998 = vrot.slane %v997, 1
    %v999 = vadd.f32 %v997, %v998
    %v1000 = vsel %vm486, %v949, 0.0
    %v1001 = vsel %vm486, %v950, 0.0
    %v1002 = vadd.f32 %v1000, %v1001
    %v1003 = vrot.slane %v1002, 4
    %v1004 = vadd.f32 %v1002, %v1003
    %v1005 = vrot.slane %v1004, 2
    %v1006 = vadd.f32 %v1004, %v1005
    %v1007 = vrot.slane %v1006, 1
    %v1008 = vadd.f32 %v1006, %v1007
    %v1009 = vsel %vm486, %v951, 0.0
    %v1010 = vsel %vm486, %v952, 0.0
    %v1011 = vadd.f32 %v1009, %v1010
    %v1012 = vrot.slane %v1011, 4
    %v1013 = vadd.f32 %v1011, %v1012
    %v1014 = vrot.slane %v1013, 2
    %v1015 = vadd.f32 %v1013, %v1014
    %v1016 = vrot.slane %v1015, 1
    %v1017 = vadd.f32 %v1015, %v1016
    %v1018 = vsel %vm486, %v953, 0.0
    %v1019 = vsel %vm486, %v954, 0.0
    %v1020 = vadd.f32 %v1018, %v1019
    %v1021 = vrot.slane %v1020, 4
    %v1022 = vadd.f32 %v1020, %v1021
    %v1023 = vrot.slane %v1022, 2
    %v1024 = vadd.f32 %v1022, %v1023
    %v1025 = vrot.slane %v1024, 1
    %v1026 = vadd.f32 %v1024, %v1025
    %v1027 = vrcp.pop 16.0
    %v1028 = vmul.f32 16.0, %v1027
    %v1029 = vsub.f32 1.0, %v1028
    %v1030 = vmul.f32 %v1027, %v1029
    %v1031 = vadd.f32 %v1027, %v1030
    %vm1032 = vweird.f32 %v1027
    %v1033 = vsel %vm1032, %v1027, %v1031
    %v1034 = vmul.f32 %v963, %v1033
    %v1035 = vmul.f32 %v972, %v1033
    %v1036 = vmul.f32 %v981, %v1033
    %v1037 = vmul.f32 %v990, %v1033
    %v1038 = vmul.f32 %v999, %v1033
    %v1039 = vmul.f32 %v1008, %v1033
    %v1040 = vmul.f32 %v1017, %v1033
    %v1041 = vmul.f32 %v1026, %v1033
    %1042 = vrot.lane.b32.xlu0 %v403, 96
    %v1043 = vpop.permute.xlu0 %1042
    %v1046 = vsel %vm486, %v1034, 0
    %1048 = vmatpush.msra.mxu0 0.0
    %1049 = vmatpush.msra.mxu0 0.0
    %1050 = vmatpush.msra.mxu0 0.0
    %1051 = vmatpush.msra.mxu0 0.0
    %1052 = vmatpush.msra.mxu0 0.0
    %1053 = vmatpush.msra.mxu0 0.0
    %1054 = vmatpush.msra.mxu0 0.0
    %1055 = vmatpush.msra.mxu0 0.0
    %1056 = vmatpush.msra.mxu0 0.0
    %1057 = vmatpush.msra.mxu0 0.0
    %1058 = vmatpush.msra.mxu0 0.0
    %1059 = vmatpush.msra.mxu0 0.0
    %1060 = vmatpush.msra.mxu0 0.0
    %1061 = vmatpush.msra.mxu0 0.0
    %1062 = vmatpush.msra.mxu0 0.0
    %1063 = vmatpush.msra.mxu0 %v1043
    %1064 = vmatmul.f32.gmra.mxu0 %v1046
    %v1065 = vpop.f32.mrf.mxu0
    %v1066 = vadd.f32 0.0, %v1065
    %1067 = vdwg.mxu0
    %1068 = vrot.lane.b32.xlu0 %v406, 96
    %v1069 = vpop.permute.xlu0 %1068
    %v1072 = vsel %vm486, %v1038, 0
    %1074 = vmatpush.msra.mxu0 0.0
    %1075 = vmatpush.msra.mxu0 0.0
    %1076 = vmatpush.msra.mxu0 0.0
    %1077 = vmatpush.msra.mxu0 0.0
    %1078 = vmatpush.msra.mxu0 0.0
    %1079 = vmatpush.msra.mxu0 0.0
    %1080 = vmatpush.msra.mxu0 0.0
    %1081 = vmatpush.msra.mxu0 0.0
    %1082 = vmatpush.msra.mxu0 0.0
    %1083 = vmatpush.msra.mxu0 0.0
    %1084 = vmatpush.msra.mxu0 0.0
    %1085 = vmatpush.msra.mxu0 0.0
    %1086 = vmatpush.msra.mxu0 0.0
    %1087 = vmatpush.msra.mxu0 0.0
    %1088 = vmatpush.msra.mxu0 0.0
    %1089 = vmatpush.msra.mxu0 %v1069
    %1090 = vmatmul.f32.gmra.mxu0 %v1072
    %v1091 = vpop.f32.mrf.mxu0
    %v1092 = vadd.f32 0.0, %v1091
    %1093 = vdwg.mxu0
    %1094 = vrot.lane.b32.xlu0 %v403, 88
    %v1095 = vpop.permute.xlu0 %1094
    %v1098 = vsel %vm486, %v1035, 0
    %1100 = vmatpush.msra.mxu0 0.0
    %1101 = vmatpush.msra.mxu0 0.0
    %1102 = vmatpush.msra.mxu0 0.0
    %1103 = vmatpush.msra.mxu0 0.0
    %1104 = vmatpush.msra.mxu0 0.0
    %1105 = vmatpush.msra.mxu0 0.0
    %1106 = vmatpush.msra.mxu0 0.0
    %1107 = vmatpush.msra.mxu0 0.0
    %1108 = vmatpush.msra.mxu0 0.0
    %1109 = vmatpush.msra.mxu0 0.0
    %1110 = vmatpush.msra.mxu0 0.0
    %1111 = vmatpush.msra.mxu0 0.0
    %1112 = vmatpush.msra.mxu0 0.0
    %1113 = vmatpush.msra.mxu0 0.0
    %1114 = vmatpush.msra.mxu0 0.0
    %1115 = vmatpush.msra.mxu0 %v1095
    %1116 = vmatmul.f32.gmra.mxu0 %v1098
    %v1117 = vpop.f32.mrf.mxu0
    %v1118 = vadd.f32 0.0, %v1117
    %1119 = vdwg.mxu0
    %1120 = vrot.lane.b32.xlu0 %v406, 88
    %v1121 = vpop.permute.xlu0 %1120
    %v1124 = vsel %vm486, %v1039, 0
    %1126 = vmatpush.msra.mxu0 0.0
    %1127 = vmatpush.msra.mxu0 0.0
    %1128 = vmatpush.msra.mxu0 0.0
    %1129 = vmatpush.msra.mxu0 0.0
    %1130 = vmatpush.msra.mxu0 0.0
    %1131 = vmatpush.msra.mxu0 0.0
    %1132 = vmatpush.msra.mxu0 0.0
    %1133 = vmatpush.msra.mxu0 0.0
    %1134 = vmatpush.msra.mxu0 0.0
    %1135 = vmatpush.msra.mxu0 0.0
    %1136 = vmatpush.msra.mxu0 0.0
    %1137 = vmatpush.msra.mxu0 0.0
    %1138 = vmatpush.msra.mxu0 0.0
    %1139 = vmatpush.msra.mxu0 0.0
    %1140 = vmatpush.msra.mxu0 0.0
    %1141 = vmatpush.msra.mxu0 %v1121
    %1142 = vmatmul.f32.gmra.mxu0 %v1124
    %v1143 = vpop.f32.mrf.mxu0
    %v1144 = vadd.f32 0.0, %v1143
    %1145 = vdwg.mxu0
    %1146 = vrot.lane.b32.xlu0 %v403, 80
    %v1147 = vpop.permute.xlu0 %1146
    %v1150 = vsel %vm486, %v1036, 0
    %1152 = vmatpush.msra.mxu0 0.0
    %1153 = vmatpush.msra.mxu0 0.0
    %1154 = vmatpush.msra.mxu0 0.0
    %1155 = vmatpush.msra.mxu0 0.0
    %1156 = vmatpush.msra.mxu0 0.0
    %1157 = vmatpush.msra.mxu0 0.0
    %1158 = vmatpush.msra.mxu0 0.0
    %1159 = vmatpush.msra.mxu0 0.0
    %1160 = vmatpush.msra.mxu0 0.0
    %1161 = vmatpush.msra.mxu0 0.0
    %1162 = vmatpush.msra.mxu0 0.0
    %1163 = vmatpush.msra.mxu0 0.0
    %1164 = vmatpush.msra.mxu0 0.0
    %1165 = vmatpush.msra.mxu0 0.0
    %1166 = vmatpush.msra.mxu0 0.0
    %1167 = vmatpush.msra.mxu0 %v1147
    %1168 = vmatmul.f32.gmra.mxu0 %v1150
    %v1169 = vpop.f32.mrf.mxu0
    %v1170 = vadd.f32 0.0, %v1169
    %1171 = vdwg.mxu0
    %1172 = vrot.lane.b32.xlu0 %v406, 80
    %v1173 = vpop.permute.xlu0 %1172
    %v1176 = vsel %vm486, %v1040, 0
    %1178 = vmatpush.msra.mxu0 0.0
    %1179 = vmatpush.msra.mxu0 0.0
    %1180 = vmatpush.msra.mxu0 0.0
    %1181 = vmatpush.msra.mxu0 0.0
    %1182 = vmatpush.msra.mxu0 0.0
    %1183 = vmatpush.msra.mxu0 0.0
    %1184 = vmatpush.msra.mxu0 0.0
    %1185 = vmatpush.msra.mxu0 0.0
    %1186 = vmatpush.msra.mxu0 0.0
    %1187 = vmatpush.msra.mxu0 0.0
    %1188 = vmatpush.msra.mxu0 0.0
    %1189 = vmatpush.msra.mxu0 0.0
    %1190 = vmatpush.msra.mxu0 0.0
    %1191 = vmatpush.msra.mxu0 0.0
    %1192 = vmatpush.msra.mxu0 0.0
    %1193 = vmatpush.msra.mxu0 %v1173
    %1194 = vmatmul.f32.gmra.mxu0 %v1176
    %v1195 = vpop.f32.mrf.mxu0
    %v1196 = vadd.f32 0.0, %v1195
    %1197 = vdwg.mxu0
    %1198 = vrot.lane.b32.xlu0 %v403, 72
    %v1199 = vpop.permute.xlu0 %1198
    %v1202 = vsel %vm486, %v1037, 0
    %1204 = vmatpush.msra.mxu0 0.0
    %1205 = vmatpush.msra.mxu0 0.0
    %1206 = vmatpush.msra.mxu0 0.0
    %1207 = vmatpush.msra.mxu0 0.0
    %1208 = vmatpush.msra.mxu0 0.0
    %1209 = vmatpush.msra.mxu0 0.0
    %1210 = vmatpush.msra.mxu0 0.0
    %1211 = vmatpush.msra.mxu0 0.0
    %1212 = vmatpush.msra.mxu0 0.0
    %1213 = vmatpush.msra.mxu0 0.0
    %1214 = vmatpush.msra.mxu0 0.0
    %1215 = vmatpush.msra.mxu0 0.0
    %1216 = vmatpush.msra.mxu0 0.0
    %1217 = vmatpush.msra.mxu0 0.0
    %1218 = vmatpush.msra.mxu0 0.0
    %1219 = vmatpush.msra.mxu0 %v1199
    %1220 = vmatmul.f32.gmra.mxu0 %v1202
    %v1221 = vpop.f32.mrf.mxu0
    %v1222 = vadd.f32 0.0, %v1221
    %1223 = vdwg.mxu0
    %1224 = vrot.lane.b32.xlu0 %v406, 72
    %v1225 = vpop.permute.xlu0 %1224
    %v1228 = vsel %vm486, %v1041, 0
    %1230 = vmatpush.msra.mxu0 0.0
    %1231 = vmatpush.msra.mxu0 0.0
    %1232 = vmatpush.msra.mxu0 0.0
    %1233 = vmatpush.msra.mxu0 0.0
    %1234 = vmatpush.msra.mxu0 0.0
    %1235 = vmatpush.msra.mxu0 0.0
    %1236 = vmatpush.msra.mxu0 0.0
    %1237 = vmatpush.msra.mxu0 0.0
    %1238 = vmatpush.msra.mxu0 0.0
    %1239 = vmatpush.msra.mxu0 0.0
    %1240 = vmatpush.msra.mxu0 0.0
    %1241 = vmatpush.msra.mxu0 0.0
    %1242 = vmatpush.msra.mxu0 0.0
    %1243 = vmatpush.msra.mxu0 0.0
    %1244 = vmatpush.msra.mxu0 0.0
    %1245 = vmatpush.msra.mxu0 %v1225
    %1246 = vmatmul.f32.gmra.mxu0 %v1228
    %v1247 = vpop.f32.mrf.mxu0
    %v1248 = vadd.f32 0.0, %v1247
    %1249 = vdwg.mxu0
    %v1251 = vsel %vm486, %v436, 0
    %v1254 = vsel %vm486, %v475, 0
    %v1257 = vsel %vm486, %v478, 0
    %1259 = vmatpush.xpose.msra.mxu0 0.0
    %1260 = vmatpush.xpose.msra.mxu0 0.0
    %1261 = vmatpush.xpose.msra.mxu0 0.0
    %1262 = vmatpush.xpose.msra.mxu0 0.0
    %1263 = vmatpush.xpose.msra.mxu0 0.0
    %1264 = vmatpush.xpose.msra.mxu0 0.0
    %1265 = vmatpush.xpose.msra.mxu0 0.0
    %1266 = vmatpush.xpose.msra.mxu0 0.0
    %1267 = vmatpush.xpose.msra.mxu0 0.0
    %1268 = vmatpush.xpose.msra.mxu0 0.0
    %1269 = vmatpush.xpose.msra.mxu0 0.0
    %1270 = vmatpush.xpose.msra.mxu0 0.0
    %1271 = vmatpush.xpose.msra.mxu0 0.0
    %1272 = vmatpush.xpose.msra.mxu0 0.0
    %1273 = vmatpush.xpose.msra.mxu0 %v1257
    %1274 = vmatpush.xpose.msra.mxu0 %v1254
    %1275 = vmatmul.f32.gmra.mxu0 %v1251
    %v1276 = vpop.f32.mrf.mxu0
    %v1277 = vadd.f32 0.0, %v1276
    %1278 = vdwg.mxu0
    %v1280 = vsel %vm486, %v439, 0
    %v1283 = vsel %vm486, %v481, 0
    %v1286 = vsel %vm486, %v484, 0
    %1288 = vmatpush.xpose.msra.mxu0 0.0
    %1289 = vmatpush.xpose.msra.mxu0 0.0
    %1290 = vmatpush.xpose.msra.mxu0 0.0
    %1291 = vmatpush.xpose.msra.mxu0 0.0
    %1292 = vmatpush.xpose.msra.mxu0 0.0
    %1293 = vmatpush.xpose.msra.mxu0 0.0
    %1294 = vmatpush.xpose.msra.mxu0 0.0
    %1295 = vmatpush.xpose.msra.mxu0 0.0
    %1296 = vmatpush.xpose.msra.mxu0 0.0
    %1297 = vmatpush.xpose.msra.mxu0 0.0
    %1298 = vmatpush.xpose.msra.mxu0 0.0
    %1299 = vmatpush.xpose.msra.mxu0 0.0
    %1300 = vmatpush.xpose.msra.mxu0 0.0
    %1301 = vmatpush.xpose.msra.mxu0 0.0
    %1302 = vmatpush.xpose.msra.mxu0 %v1286
    %1303 = vmatpush.xpose.msra.mxu0 %v1283
    %1304 = vmatmul.f32.gmra.mxu0 %v1280
    %v1305 = vpop.f32.mrf.mxu0
    %v1306 = vadd.f32 0.0, %v1305
    %1307 = vdwg.mxu0
    %1308 = vrot.lane.b32.xlu0 %v436, 120
    %v1309 = vpop.permute.xlu0 %1308
    %1310 = vrot.lane.b32.xlu0 %v475, 120
    %v1311 = vpop.permute.xlu0 %1310
    %1312 = vrot.lane.b32.xlu0 %v478, 120
    %v1313 = vpop.permute.xlu0 %1312
    %v1314 = vsel %vm486, %v1309, 0
    %v1316 = vsel %vm486, %v1311, 0
    %v1318 = vsel %vm486, %v1313, 0
    %1320 = vmatpush.xpose.msra.mxu0 0.0
    %1321 = vmatpush.xpose.msra.mxu0 0.0
    %1322 = vmatpush.xpose.msra.mxu0 0.0
    %1323 = vmatpush.xpose.msra.mxu0 0.0
    %1324 = vmatpush.xpose.msra.mxu0 0.0
    %1325 = vmatpush.xpose.msra.mxu0 0.0
    %1326 = vmatpush.xpose.msra.mxu0 0.0
    %1327 = vmatpush.xpose.msra.mxu0 0.0
    %1328 = vmatpush.xpose.msra.mxu0 0.0
    %1329 = vmatpush.xpose.msra.mxu0 0.0
    %1330 = vmatpush.xpose.msra.mxu0 0.0
    %1331 = vmatpush.xpose.msra.mxu0 0.0
    %1332 = vmatpush.xpose.msra.mxu0 0.0
    %1333 = vmatpush.xpose.msra.mxu0 0.0
    %1334 = vmatpush.xpose.msra.mxu0 %v1318
    %1335 = vmatpush.xpose.msra.mxu0 %v1316
    %1336 = vmatmul.f32.gmra.mxu0 %v1314
    %v1337 = vpop.f32.mrf.mxu0
    %v1338 = vadd.f32 0.0, %v1337
    %1339 = vdwg.mxu0
    %1340 = vrot.lane.b32.xlu0 %v439, 120
    %v1341 = vpop.permute.xlu0 %1340
    %1342 = vrot.lane.b32.xlu0 %v481, 120
    %v1343 = vpop.permute.xlu0 %1342
    %1344 = vrot.lane.b32.xlu0 %v484, 120
    %v1345 = vpop.permute.xlu0 %1344
    %v1346 = vsel %vm486, %v1341, 0
    %v1348 = vsel %vm486, %v1343, 0
    %v1350 = vsel %vm486, %v1345, 0
    %1352 = vmatpush.xpose.msra.mxu0 0.0
    %1353 = vmatpush.xpose.msra.mxu0 0.0
    %1354 = vmatpush.xpose.msra.mxu0 0.0
    %1355 = vmatpush.xpose.msra.mxu0 0.0
    %1356 = vmatpush.xpose.msra.mxu0 0.0
    %1357 = vmatpush.xpose.msra.mxu0 0.0
    %1358 = vmatpush.xpose.msra.mxu0 0.0
    %1359 = vmatpush.xpose.msra.mxu0 0.0
    %1360 = vmatpush.xpose.msra.mxu0 0.0
    %1361 = vmatpush.xpose.msra.mxu0 0.0
    %1362 = vmatpush.xpose.msra.mxu0 0.0
    %1363 = vmatpush.xpose.msra.mxu0 0.0
    %1364 = vmatpush.xpose.msra.mxu0 0.0
    %1365 = vmatpush.xpose.msra.mxu0 0.0
    %1366 = vmatpush.xpose.msra.mxu0 %v1350
    %1367 = vmatpush.xpose.msra.mxu0 %v1348
    %1368 = vmatmul.f32.gmra.mxu0 %v1346
    %v1369 = vpop.f32.mrf.mxu0
    %v1370 = vadd.f32 0.0, %v1369
    %1371 = vdwg.mxu0
    %1372 = vrot.lane.b32.xlu0 %v436, 112
    %v1373 = vpop.permute.xlu0 %1372
    %1374 = vrot.lane.b32.xlu0 %v475, 112
    %v1375 = vpop.permute.xlu0 %1374
    %1376 = vrot.lane.b32.xlu0 %v478, 112
    %v1377 = vpop.permute.xlu0 %1376
    %v1378 = vsel %vm486, %v1373, 0
    %v1380 = vsel %vm486, %v1375, 0
    %v1382 = vsel %vm486, %v1377, 0
    %1384 = vmatpush.xpose.msra.mxu0 0.0
    %1385 = vmatpush.xpose.msra.mxu0 0.0
    %1386 = vmatpush.xpose.msra.mxu0 0.0
    %1387 = vmatpush.xpose.msra.mxu0 0.0
    %1388 = vmatpush.xpose.msra.mxu0 0.0
    %1389 = vmatpush.xpose.msra.mxu0 0.0
    %1390 = vmatpush.xpose.msra.mxu0 0.0
    %1391 = vmatpush.xpose.msra.mxu0 0.0
    %1392 = vmatpush.xpose.msra.mxu0 0.0
    %1393 = vmatpush.xpose.msra.mxu0 0.0
    %1394 = vmatpush.xpose.msra.mxu0 0.0
    %1395 = vmatpush.xpose.msra.mxu0 0.0
    %1396 = vmatpush.xpose.msra.mxu0 0.0
    %1397 = vmatpush.xpose.msra.mxu0 0.0
    %1398 = vmatpush.xpose.msra.mxu0 %v1382
    %1399 = vmatpush.xpose.msra.mxu0 %v1380
    %1400 = vmatmul.f32.gmra.mxu0 %v1378
    %v1401 = vpop.f32.mrf.mxu0
    %v1402 = vadd.f32 0.0, %v1401
    %1403 = vdwg.mxu0
    %1404 = vrot.lane.b32.xlu0 %v439, 112
    %v1405 = vpop.permute.xlu0 %1404
    %1406 = vrot.lane.b32.xlu0 %v481, 112
    %v1407 = vpop.permute.xlu0 %1406
    %1408 = vrot.lane.b32.xlu0 %v484, 112
    %v1409 = vpop.permute.xlu0 %1408
    %v1410 = vsel %vm486, %v1405, 0
    %v1412 = vsel %vm486, %v1407, 0
    %v1414 = vsel %vm486, %v1409, 0
    %1416 = vmatpush.xpose.msra.mxu0 0.0
    %1417 = vmatpush.xpose.msra.mxu0 0.0
    %1418 = vmatpush.xpose.msra.mxu0 0.0
    %1419 = vmatpush.xpose.msra.mxu0 0.0
    %1420 = vmatpush.xpose.msra.mxu0 0.0
    %1421 = vmatpush.xpose.msra.mxu0 0.0
    %1422 = vmatpush.xpose.msra.mxu0 0.0
    %1423 = vmatpush.xpose.msra.mxu0 0.0
    %1424 = vmatpush.xpose.msra.mxu0 0.0
    %1425 = vmatpush.xpose.msra.mxu0 0.0
    %1426 = vmatpush.xpose.msra.mxu0 0.0
    %1427 = vmatpush.xpose.msra.mxu0 0.0
    %1428 = vmatpush.xpose.msra.mxu0 0.0
    %1429 = vmatpush.xpose.msra.mxu0 0.0
    %1430 = vmatpush.xpose.msra.mxu0 %v1414
    %1431 = vmatpush.xpose.msra.mxu0 %v1412
    %1432 = vmatmul.f32.gmra.mxu0 %v1410
    %v1433 = vpop.f32.mrf.mxu0
    %v1434 = vadd.f32 0.0, %v1433
    %1435 = vdwg.mxu0
    %1436 = vrot.lane.b32.xlu0 %v436, 104
    %v1437 = vpop.permute.xlu0 %1436
    %1438 = vrot.lane.b32.xlu0 %v475, 104
    %v1439 = vpop.permute.xlu0 %1438
    %1440 = vrot.lane.b32.xlu0 %v478, 104
    %v1441 = vpop.permute.xlu0 %1440
    %v1442 = vsel %vm486, %v1437, 0
    %v1444 = vsel %vm486, %v1439, 0
    %v1446 = vsel %vm486, %v1441, 0
    %1448 = vmatpush.xpose.msra.mxu0 0.0
    %1449 = vmatpush.xpose.msra.mxu0 0.0
    %1450 = vmatpush.xpose.msra.mxu0 0.0
    %1451 = vmatpush.xpose.msra.mxu0 0.0
    %1452 = vmatpush.xpose.msra.mxu0 0.0
    %1453 = vmatpush.xpose.msra.mxu0 0.0
    %1454 = vmatpush.xpose.msra.mxu0 0.0
    %1455 = vmatpush.xpose.msra.mxu0 0.0
    %1456 = vmatpush.xpose.msra.mxu0 0.0
    %1457 = vmatpush.xpose.msra.mxu0 0.0
    %1458 = vmatpush.xpose.msra.mxu0 0.0
    %1459 = vmatpush.xpose.msra.mxu0 0.0
    %1460 = vmatpush.xpose.msra.mxu0 0.0
    %1461 = vmatpush.xpose.msra.mxu0 0.0
    %1462 = vmatpush.xpose.msra.mxu0 %v1446
    %1463 = vmatpush.xpose.msra.mxu0 %v1444
    %1464 = vmatmul.f32.gmra.mxu0 %v1442
    %v1465 = vpop.f32.mrf.mxu0
    %v1466 = vadd.f32 0.0, %v1465
    %1467 = vdwg.mxu0
    %1468 = vrot.lane.b32.xlu0 %v439, 104
    %v1469 = vpop.permute.xlu0 %1468
    %1470 = vrot.lane.b32.xlu0 %v481, 104
    %v1471 = vpop.permute.xlu0 %1470
    %1472 = vrot.lane.b32.xlu0 %v484, 104
    %v1473 = vpop.permute.xlu0 %1472
    %v1474 = vsel %vm486, %v1469, 0
    %v1476 = vsel %vm486, %v1471, 0
    %v1478 = vsel %vm486, %v1473, 0
    %1480 = vmatpush.xpose.msra.mxu0 0.0
    %1481 = vmatpush.xpose.msra.mxu0 0.0
    %1482 = vmatpush.xpose.msra.mxu0 0.0
    %1483 = vmatpush.xpose.msra.mxu0 0.0
    %1484 = vmatpush.xpose.msra.mxu0 0.0
    %1485 = vmatpush.xpose.msra.mxu0 0.0
    %1486 = vmatpush.xpose.msra.mxu0 0.0
    %1487 = vmatpush.xpose.msra.mxu0 0.0
    %1488 = vmatpush.xpose.msra.mxu0 0.0
    %1489 = vmatpush.xpose.msra.mxu0 0.0
    %1490 = vmatpush.xpose.msra.mxu0 0.0
    %1491 = vmatpush.xpose.msra.mxu0 0.0
    %1492 = vmatpush.xpose.msra.mxu0 0.0
    %1493 = vmatpush.xpose.msra.mxu0 0.0
    %1494 = vmatpush.xpose.msra.mxu0 %v1478
    %1495 = vmatpush.xpose.msra.mxu0 %v1476
    %1496 = vmatmul.f32.gmra.mxu0 %v1474
    %v1497 = vpop.f32.mrf.mxu0
    %v1498 = vadd.f32 0.0, %v1497
    %1499 = vdwg.mxu0
    %vm1500 = vcmask 130048
    %v1501 = vsel %vm1500, %v1277, -inf
    %1502 = vmax.xlane.f32.xlu0 %v1501
    %v1503 = vpop.xlane.xlu0 %1502
    %v1504 = vsel %vm1500, %v1338, -inf
    %1505 = vmax.xlane.f32.xlu0 %v1504
    %v1506 = vpop.xlane.xlu0 %1505
    %v1507 = vsel %vm1500, %v1402, -inf
    %1508 = vmax.xlane.f32.xlu0 %v1507
    %v1509 = vpop.xlane.xlu0 %1508
    %v1510 = vsel %vm1500, %v1466, -inf
    %1511 = vmax.xlane.f32.xlu0 %v1510
    %v1512 = vpop.xlane.xlu0 %1511
    %v1513 = vsel %vm1500, %v1306, -inf
    %1514 = vmax.xlane.f32.xlu0 %v1513
    %v1515 = vpop.xlane.xlu0 %1514
    %v1516 = vsel %vm1500, %v1370, -inf
    %1517 = vmax.xlane.f32.xlu0 %v1516
    %v1518 = vpop.xlane.xlu0 %1517
    %v1519 = vsel %vm1500, %v1434, -inf
    %1520 = vmax.xlane.f32.xlu0 %v1519
    %v1521 = vpop.xlane.xlu0 %1520
    %v1522 = vsel %vm1500, %v1498, -inf
    %1523 = vmax.xlane.f32.xlu0 %v1522
    %v1524 = vpop.xlane.xlu0 %1523
    %v1525 = vsub.f32 %v1277, %v1503
    %v1526 = vsub.f32 %v1338, %v1506
    %v1527 = vsub.f32 %v1402, %v1509
    %v1528 = vsub.f32 %v1466, %v1512
    %v1529 = vsub.f32 %v1306, %v1515
    %v1530 = vsub.f32 %v1370, %v1518
    %v1531 = vsub.f32 %v1434, %v1521
    %v1532 = vsub.f32 %v1498, %v1524
    %v1533 = vmul.f32 %v1525, 1.442695
    %v1534 = vpow.pop %v1533
    %v1535 = vmul.f32 %v1526, 1.442695
    %v1536 = vpow.pop %v1535
    %v1537 = vmul.f32 %v1527, 1.442695
    %v1538 = vpow.pop %v1537
    %v1539 = vmul.f32 %v1528, 1.442695
    %v1540 = vpow.pop %v1539
    %v1541 = vmul.f32 %v1529, 1.442695
    %v1542 = vpow.pop %v1541
    %v1543 = vmul.f32 %v1530, 1.442695
    %v1544 = vpow.pop %v1543
    %v1545 = vmul.f32 %v1531, 1.442695
    %v1546 = vpow.pop %v1545
    %v1547 = vmul.f32 %v1532, 1.442695
    %v1548 = vpow.pop %v1547
    %v1549 = vsel %vm1500, %v1534, 0.0
    %1550 = vadd.xlane.f32.xlu0 %v1549
    %v1551 = vpop.xlane.xlu0 %1550
    %v1552 = vsel %vm1500, %v1536, 0.0
    %1553 = vadd.xlane.f32.xlu0 %v1552
    %v1554 = vpop.xlane.xlu0 %1553
    %v1555 = vsel %vm1500, %v1538, 0.0
    %1556 = vadd.xlane.f32.xlu0 %v1555
    %v1557 = vpop.xlane.xlu0 %1556
    %v1558 = vsel %vm1500, %v1540, 0.0
    %1559 = vadd.xlane.f32.xlu0 %v1558
    %v1560 = vpop.xlane.xlu0 %1559
    %v1561 = vsel %vm1500, %v1542, 0.0
    %1562 = vadd.xlane.f32.xlu0 %v1561
    %v1563 = vpop.xlane.xlu0 %1562
    %v1564 = vsel %vm1500, %v1544, 0.0
    %1565 = vadd.xlane.f32.xlu0 %v1564
    %v1566 = vpop.xlane.xlu0 %1565
    %v1567 = vsel %vm1500, %v1546, 0.0
    %1568 = vadd.xlane.f32.xlu0 %v1567
    %v1569 = vpop.xlane.xlu0 %1568
    %v1570 = vsel %vm1500, %v1548, 0.0
    %1571 = vadd.xlane.f32.xlu0 %v1570
    %v1572 = vpop.xlane.xlu0 %1571
    %v1573 = vrcp.pop %v1551
    %v1574 = vrcp.pop %v1554
    %v1575 = vrcp.pop %v1557
    %v1576 = vrcp.pop %v1560
    %v1577 = vrcp.pop %v1563
    %v1578 = vrcp.pop %v1566
    %v1579 = vrcp.pop %v1569
    %v1580 = vrcp.pop %v1572
    %v1581 = vmul.f32 %v1534, %v1573
    %v1582 = vmul.f32 %v1536, %v1574
    %v1583 = vmul.f32 %v1538, %v1575
    %v1584 = vmul.f32 %v1540, %v1576
    %v1585 = vmul.f32 %v1542, %v1577
    %v1586 = vmul.f32 %v1544, %v1578
    %v1587 = vmul.f32 %v1546, %v1579
    %v1588 = vmul.f32 %v1548, %v1580
    %v1589 = vsel %vm1500, %v1581, 0.0
    %v1590 = vrot.slane %v1589, 4
    %v1591 = vadd.f32 %v1589, %v1590
    %v1592 = vrot.slane %v1591, 2
    %v1593 = vadd.f32 %v1591, %v1592
    %v1594 = vrot.slane %v1593, 1
    %v1595 = vadd.f32 %v1593, %v1594
    %v1596 = vsel %vm1500, %v1582, 0.0
    %v1597 = vrot.slane %v1596, 4
    %v1598 = vadd.f32 %v1596, %v1597
    %v1599 = vrot.slane %v1598, 2
    %v1600 = vadd.f32 %v1598, %v1599
    %v1601 = vrot.slane %v1600, 1
    %v1602 = vadd.f32 %v1600, %v1601
    %v1603 = vsel %vm1500, %v1583, 0.0
    %v1604 = vrot.slane %v1603, 4
    %v1605 = vadd.f32 %v1603, %v1604
    %v1606 = vrot.slane %v1605, 2
    %v1607 = vadd.f32 %v1605, %v1606
    %v1608 = vrot.slane %v1607, 1
    %v1609 = vadd.f32 %v1607, %v1608
    %v1610 = vsel %vm1500, %v1584, 0.0
    %v1611 = vrot.slane %v1610, 4
    %v1612 = vadd.f32 %v1610, %v1611
    %v1613 = vrot.slane %v1612, 2
    %v1614 = vadd.f32 %v1612, %v1613
    %v1615 = vrot.slane %v1614, 1
    %v1616 = vadd.f32 %v1614, %v1615
    %v1617 = vsel %vm1500, %v1585, 0.0
    %v1618 = vrot.slane %v1617, 4
    %v1619 = vadd.f32 %v1617, %v1618
    %v1620 = vrot.slane %v1619, 2
    %v1621 = vadd.f32 %v1619, %v1620
    %v1622 = vrot.slane %v1621, 1
    %v1623 = vadd.f32 %v1621, %v1622
    %v1624 = vsel %vm1500, %v1586, 0.0
    %v1625 = vrot.slane %v1624, 4
    %v1626 = vadd.f32 %v1624, %v1625
    %v1627 = vrot.slane %v1626, 2
    %v1628 = vadd.f32 %v1626, %v1627
    %v1629 = vrot.slane %v1628, 1
    %v1630 = vadd.f32 %v1628, %v1629
    %v1631 = vsel %vm1500, %v1587, 0.0
    %v1632 = vrot.slane %v1631, 4
    %v1633 = vadd.f32 %v1631, %v1632
    %v1634 = vrot.slane %v1633, 2
    %v1635 = vadd.f32 %v1633, %v1634
    %v1636 = vrot.slane %v1635, 1
    %v1637 = vadd.f32 %v1635, %v1636
    %v1638 = vsel %vm1500, %v1588, 0.0
    %v1639 = vrot.slane %v1638, 4
    %v1640 = vadd.f32 %v1638, %v1639
    %v1641 = vrot.slane %v1640, 2
    %v1642 = vadd.f32 %v1640, %v1641
    %v1643 = vrot.slane %v1642, 1
    %v1644 = vadd.f32 %v1642, %v1643
    %v1645 = vrcp.pop 8.0
    %v1646 = vmul.f32 8.0, %v1645
    %v1647 = vsub.f32 1.0, %v1646
    %v1648 = vmul.f32 %v1645, %v1647
    %v1649 = vadd.f32 %v1645, %v1648
    %vm1650 = vweird.f32 %v1645
    %v1651 = vsel %vm1650, %v1645, %v1649
    %v1652 = vmul.f32 %v1595, %v1651
    %v1653 = vmul.f32 %v1602, %v1651
    %v1654 = vmul.f32 %v1609, %v1651
    %v1655 = vmul.f32 %v1616, %v1651
    %v1656 = vmul.f32 %v1623, %v1651
    %v1657 = vmul.f32 %v1630, %v1651
    %v1658 = vmul.f32 %v1637, %v1651
    %v1659 = vmul.f32 %v1644, %v1651
    %1660 = vrot.lane.b32.xlu0 %v475, 96
    %v1661 = vpop.permute.xlu0 %1660
    %1662 = vrot.lane.b32.xlu0 %v478, 96
    %v1663 = vpop.permute.xlu0 %1662
    %v1667 = vsel %vm1500, %v1652, 0
    %1669 = vmatpush.msra.mxu0 0.0
    %1670 = vmatpush.msra.mxu0 0.0
    %1671 = vmatpush.msra.mxu0 0.0
    %1672 = vmatpush.msra.mxu0 0.0
    %1673 = vmatpush.msra.mxu0 0.0
    %1674 = vmatpush.msra.mxu0 0.0
    %1675 = vmatpush.msra.mxu0 0.0
    %1676 = vmatpush.msra.mxu0 0.0
    %1677 = vmatpush.msra.mxu0 0.0
    %1678 = vmatpush.msra.mxu0 0.0
    %1679 = vmatpush.msra.mxu0 0.0
    %1680 = vmatpush.msra.mxu0 0.0
    %1681 = vmatpush.msra.mxu0 0.0
    %1682 = vmatpush.msra.mxu0 0.0
    %1683 = vmatpush.msra.mxu0 %v1663
    %1684 = vmatpush.msra.mxu0 %v1661
    %1685 = vmatmul.f32.gmra.mxu0 %v1667
    %v1686 = vpop.f32.mrf.mxu0
    %v1687 = vadd.f32 0.0, %v1686
    %1688 = vdwg.mxu0
    %1689 = vrot.lane.b32.xlu0 %v481, 96
    %v1690 = vpop.permute.xlu0 %1689
    %1691 = vrot.lane.b32.xlu0 %v484, 96
    %v1692 = vpop.permute.xlu0 %1691
    %v1696 = vsel %vm1500, %v1656, 0
    %1698 = vmatpush.msra.mxu0 0.0
    %1699 = vmatpush.msra.mxu0 0.0
    %1700 = vmatpush.msra.mxu0 0.0
    %1701 = vmatpush.msra.mxu0 0.0
    %1702 = vmatpush.msra.mxu0 0.0
    %1703 = vmatpush.msra.mxu0 0.0
    %1704 = vmatpush.msra.mxu0 0.0
    %1705 = vmatpush.msra.mxu0 0.0
    %1706 = vmatpush.msra.mxu0 0.0
    %1707 = vmatpush.msra.mxu0 0.0
    %1708 = vmatpush.msra.mxu0 0.0
    %1709 = vmatpush.msra.mxu0 0.0
    %1710 = vmatpush.msra.mxu0 0.0
    %1711 = vmatpush.msra.mxu0 0.0
    %1712 = vmatpush.msra.mxu0 %v1692
    %1713 = vmatpush.msra.mxu0 %v1690
    %1714 = vmatmul.f32.gmra.mxu0 %v1696
    %v1715 = vpop.f32.mrf.mxu0
    %v1716 = vadd.f32 0.0, %v1715
    %1717 = vdwg.mxu0
    %1718 = vrot.lane.b32.xlu0 %v475, 88
    %v1719 = vpop.permute.xlu0 %1718
    %1720 = vrot.lane.b32.xlu0 %v478, 88
    %v1721 = vpop.permute.xlu0 %1720
    %v1725 = vsel %vm1500, %v1653, 0
    %1727 = vmatpush.msra.mxu0 0.0
    %1728 = vmatpush.msra.mxu0 0.0
    %1729 = vmatpush.msra.mxu0 0.0
    %1730 = vmatpush.msra.mxu0 0.0
    %1731 = vmatpush.msra.mxu0 0.0
    %1732 = vmatpush.msra.mxu0 0.0
    %1733 = vmatpush.msra.mxu0 0.0
    %1734 = vmatpush.msra.mxu0 0.0
    %1735 = vmatpush.msra.mxu0 0.0
    %1736 = vmatpush.msra.mxu0 0.0
    %1737 = vmatpush.msra.mxu0 0.0
    %1738 = vmatpush.msra.mxu0 0.0
    %1739 = vmatpush.msra.mxu0 0.0
    %1740 = vmatpush.msra.mxu0 0.0
    %1741 = vmatpush.msra.mxu0 %v1721
    %1742 = vmatpush.msra.mxu0 %v1719
    %1743 = vmatmul.f32.gmra.mxu0 %v1725
    %v1744 = vpop.f32.mrf.mxu0
    %v1745 = vadd.f32 0.0, %v1744
    %1746 = vdwg.mxu0
    %1747 = vrot.lane.b32.xlu0 %v481, 88
    %v1748 = vpop.permute.xlu0 %1747
    %1749 = vrot.lane.b32.xlu0 %v484, 88
    %v1750 = vpop.permute.xlu0 %1749
    %v1754 = vsel %vm1500, %v1657, 0
    %1756 = vmatpush.msra.mxu0 0.0
    %1757 = vmatpush.msra.mxu0 0.0
    %1758 = vmatpush.msra.mxu0 0.0
    %1759 = vmatpush.msra.mxu0 0.0
    %1760 = vmatpush.msra.mxu0 0.0
    %1761 = vmatpush.msra.mxu0 0.0
    %1762 = vmatpush.msra.mxu0 0.0
    %1763 = vmatpush.msra.mxu0 0.0
    %1764 = vmatpush.msra.mxu0 0.0
    %1765 = vmatpush.msra.mxu0 0.0
    %1766 = vmatpush.msra.mxu0 0.0
    %1767 = vmatpush.msra.mxu0 0.0
    %1768 = vmatpush.msra.mxu0 0.0
    %1769 = vmatpush.msra.mxu0 0.0
    %1770 = vmatpush.msra.mxu0 %v1750
    %1771 = vmatpush.msra.mxu0 %v1748
    %1772 = vmatmul.f32.gmra.mxu0 %v1754
    %v1773 = vpop.f32.mrf.mxu0
    %v1774 = vadd.f32 0.0, %v1773
    %1775 = vdwg.mxu0
    %1776 = vrot.lane.b32.xlu0 %v475, 80
    %v1777 = vpop.permute.xlu0 %1776
    %1778 = vrot.lane.b32.xlu0 %v478, 80
    %v1779 = vpop.permute.xlu0 %1778
    %v1783 = vsel %vm1500, %v1654, 0
    %1785 = vmatpush.msra.mxu0 0.0
    %1786 = vmatpush.msra.mxu0 0.0
    %1787 = vmatpush.msra.mxu0 0.0
    %1788 = vmatpush.msra.mxu0 0.0
    %1789 = vmatpush.msra.mxu0 0.0
    %1790 = vmatpush.msra.mxu0 0.0
    %1791 = vmatpush.msra.mxu0 0.0
    %1792 = vmatpush.msra.mxu0 0.0
    %1793 = vmatpush.msra.mxu0 0.0
    %1794 = vmatpush.msra.mxu0 0.0
    %1795 = vmatpush.msra.mxu0 0.0
    %1796 = vmatpush.msra.mxu0 0.0
    %1797 = vmatpush.msra.mxu0 0.0
    %1798 = vmatpush.msra.mxu0 0.0
    %1799 = vmatpush.msra.mxu0 %v1779
    %1800 = vmatpush.msra.mxu0 %v1777
    %1801 = vmatmul.f32.gmra.mxu0 %v1783
    %v1802 = vpop.f32.mrf.mxu0
    %v1803 = vadd.f32 0.0, %v1802
    %1804 = vdwg.mxu0
    %1805 = vrot.lane.b32.xlu0 %v481, 80
    %v1806 = vpop.permute.xlu0 %1805
    %1807 = vrot.lane.b32.xlu0 %v484, 80
    %v1808 = vpop.permute.xlu0 %1807
    %v1812 = vsel %vm1500, %v1658, 0
    %1814 = vmatpush.msra.mxu0 0.0
    %1815 = vmatpush.msra.mxu0 0.0
    %1816 = vmatpush.msra.mxu0 0.0
    %1817 = vmatpush.msra.mxu0 0.0
    %1818 = vmatpush.msra.mxu0 0.0
    %1819 = vmatpush.msra.mxu0 0.0
    %1820 = vmatpush.msra.mxu0 0.0
    %1821 = vmatpush.msra.mxu0 0.0
    %1822 = vmatpush.msra.mxu0 0.0
    %1823 = vmatpush.msra.mxu0 0.0
    %1824 = vmatpush.msra.mxu0 0.0
    %1825 = vmatpush.msra.mxu0 0.0
    %1826 = vmatpush.msra.mxu0 0.0
    %1827 = vmatpush.msra.mxu0 0.0
    %1828 = vmatpush.msra.mxu0 %v1808
    %1829 = vmatpush.msra.mxu0 %v1806
    %1830 = vmatmul.f32.gmra.mxu0 %v1812
    %v1831 = vpop.f32.mrf.mxu0
    %v1832 = vadd.f32 0.0, %v1831
    %1833 = vdwg.mxu0
    %1834 = vrot.lane.b32.xlu0 %v475, 72
    %v1835 = vpop.permute.xlu0 %1834
    %1836 = vrot.lane.b32.xlu0 %v478, 72
    %v1837 = vpop.permute.xlu0 %1836
    %v1841 = vsel %vm1500, %v1655, 0
    %1843 = vmatpush.msra.mxu0 0.0
    %1844 = vmatpush.msra.mxu0 0.0
    %1845 = vmatpush.msra.mxu0 0.0
    %1846 = vmatpush.msra.mxu0 0.0
    %1847 = vmatpush.msra.mxu0 0.0
    %1848 = vmatpush.msra.mxu0 0.0
    %1849 = vmatpush.msra.mxu0 0.0
    %1850 = vmatpush.msra.mxu0 0.0
    %1851 = vmatpush.msra.mxu0 0.0
    %1852 = vmatpush.msra.mxu0 0.0
    %1853 = vmatpush.msra.mxu0 0.0
    %1854 = vmatpush.msra.mxu0 0.0
    %1855 = vmatpush.msra.mxu0 0.0
    %1856 = vmatpush.msra.mxu0 0.0
    %1857 = vmatpush.msra.mxu0 %v1837
    %1858 = vmatpush.msra.mxu0 %v1835
    %1859 = vmatmul.f32.gmra.mxu0 %v1841
    %v1860 = vpop.f32.mrf.mxu0
    %v1861 = vadd.f32 0.0, %v1860
    %1862 = vdwg.mxu0
    %1863 = vrot.lane.b32.xlu0 %v481, 72
    %v1864 = vpop.permute.xlu0 %1863
    %1865 = vrot.lane.b32.xlu0 %v484, 72
    %v1866 = vpop.permute.xlu0 %1865
    %v1870 = vsel %vm1500, %v1659, 0
    %1872 = vmatpush.msra.mxu0 0.0
    %1873 = vmatpush.msra.mxu0 0.0
    %1874 = vmatpush.msra.mxu0 0.0
    %1875 = vmatpush.msra.mxu0 0.0
    %1876 = vmatpush.msra.mxu0 0.0
    %1877 = vmatpush.msra.mxu0 0.0
    %1878 = vmatpush.msra.mxu0 0.0
    %1879 = vmatpush.msra.mxu0 0.0
    %1880 = vmatpush.msra.mxu0 0.0
    %1881 = vmatpush.msra.mxu0 0.0
    %1882 = vmatpush.msra.mxu0 0.0
    %1883 = vmatpush.msra.mxu0 0.0
    %1884 = vmatpush.msra.mxu0 0.0
    %1885 = vmatpush.msra.mxu0 0.0
    %1886 = vmatpush.msra.mxu0 %v1866
    %1887 = vmatpush.msra.mxu0 %v1864
    %1888 = vmatmul.f32.gmra.mxu0 %v1870
    %v1889 = vpop.f32.mrf.mxu0
    %v1890 = vadd.f32 0.0, %v1889
    %1891 = vdwg.mxu0
    %1894 = vrot.lane.b32.xlu0 %v1118, 8
    %v1895 = vpop.permute.xlu0 %1894
    %1896 = vrot.lane.b32.xlu0 %v1144, 8
    %v1897 = vpop.permute.xlu0 %1896
    %1902 = vrot.lane.b32.xlu0 %v1170, 16
    %v1903 = vpop.permute.xlu0 %1902
    %1904 = vrot.lane.b32.xlu0 %v1196, 16
    %v1905 = vpop.permute.xlu0 %1904
    %1910 = vrot.lane.b32.xlu0 %v1222, 24
    %v1911 = vpop.permute.xlu0 %1910
    %1912 = vrot.lane.b32.xlu0 %v1248, 24
    %v1913 = vpop.permute.xlu0 %1912
    %1918 = vrot.lane.b32.xlu0 %v1687, 32
    %v1919 = vpop.permute.xlu0 %1918
    %1920 = vrot.lane.b32.xlu0 %v1716, 32
    %v1921 = vpop.permute.xlu0 %1920
    %1926 = vrot.lane.b32.xlu0 %v1745, 40
    %v1927 = vpop.permute.xlu0 %1926
    %1928 = vrot.lane.b32.xlu0 %v1774, 40
    %v1929 = vpop.permute.xlu0 %1928
    %1934 = vrot.lane.b32.xlu0 %v1803, 48
    %v1935 = vpop.permute.xlu0 %1934
    %1936 = vrot.lane.b32.xlu0 %v1832, 48
    %v1937 = vpop.permute.xlu0 %1936
    %1942 = vrot.lane.b32.xlu0 %v1861, 56
    %v1943 = vpop.permute.xlu0 %1942
    %1944 = vrot.lane.b32.xlu0 %v1890, 56
    %v1945 = vpop.permute.xlu0 %1944
    %v1948 = vsel %vm486, %v1066, %v1895
    %v1949 = vsel %vm486, %v1092, %v1897
    %v1950 = vsel %vm1500, %v1948, %v1903
    %v1951 = vsel %vm1500, %v1949, %v1905
    %vm1952 = vcmask 195584
    %v1953 = vsel %vm1952, %v1950, %v1911
    %v1954 = vsel %vm1952, %v1951, %v1913
    %v1955 = vsel %vm174, %v1953, %v1919
    %v1956 = vsel %vm174, %v1954, %v1921
    %vm1957 = vcmask 326656
    %v1958 = vsel %vm1957, %v1955, %v1927
    %v1959 = vsel %vm1957, %v1956, %v1929
    %vm1960 = vcmask 392192
    %v1961 = vsel %vm1960, %v1958, %v1935
    %v1962 = vsel %vm1960, %v1959, %v1937
    %vm1963 = vcmask 457728
    %v1964 = vsel %vm1963, %v1961, %v1943
    %v1965 = vsel %vm1963, %v1962, %v1945
    %v1966 = vld [vmem:[%s7] sm:$0xff]
    %v1967 = vld [vmem:[%s7 + $0x8] sm:$0xff]
    %v1968 = vld [vmem:[%s7 + $0x10] sm:$0xff]
    %v1969 = vld [vmem:[%s7 + $0x18] sm:$0xff]
    %v1970 = vld [vmem:[%s7 + $0x20] sm:$0xff]
    %v1971 = vld [vmem:[%s7 + $0x28] sm:$0xff]
    %v1972 = vld [vmem:[%s7 + $0x30] sm:$0xff]
    %v1973 = vld [vmem:[%s7 + $0x38] sm:$0xff]
    %v1974 = vperm.slane %v104, 0
    %v1977 = vrot.slane %v1965, 7
    %vm1978 = vcmask 1041409
    %v1979 = vsel %vm1978, %v1977, %v1964
    %vm1980 = vcmask 523264
    %v1981 = vsel %vm1980, %v1979, 0
    %1983 = vmatpush.msra.mxu0 0.0
    %1984 = vmatpush.msra.mxu0 0.0
    %1985 = vmatpush.msra.mxu0 0.0
    %1986 = vmatpush.msra.mxu0 0.0
    %1987 = vmatpush.msra.mxu0 0.0
    %1988 = vmatpush.msra.mxu0 0.0
    %1989 = vmatpush.msra.mxu0 0.0
    %1990 = vmatpush.msra.mxu0 0.0
    %1991 = vmatpush.msra.mxu0 %v1973
    %1992 = vmatpush.msra.mxu0 %v1972
    %1993 = vmatpush.msra.mxu0 %v1971
    %1994 = vmatpush.msra.mxu0 %v1970
    %1995 = vmatpush.msra.mxu0 %v1969
    %1996 = vmatpush.msra.mxu0 %v1968
    %1997 = vmatpush.msra.mxu0 %v1967
    %1998 = vmatpush.msra.mxu0 %v1966
    %1999 = vmatmul.f32.gmra.mxu0 %v1981
    %v2000 = vpop.f32.mrf.mxu0
    %v2001 = vadd.f32 %v1974, %v2000
    %2002 = vdwg.mxu0
    %v2003 = vmax.f32 %v2001, 0.0
    %v2004 = vld [vmem:[%s8] sm:$0xff]
    %v2005 = vld [vmem:[%s8 + $0x8] sm:$0xff]
    %v2006 = vld [vmem:[%s8 + $0x10] sm:$0xff]
    %v2007 = vld [vmem:[%s8 + $0x18] sm:$0xff]
    %v2008 = vperm.slane %v105, 0
    %v2010 = vsel %vm174, %v2003, 0
    %2012 = vmatpush.msra.mxu0 0.0
    %2013 = vmatpush.msra.mxu0 0.0
    %2014 = vmatpush.msra.mxu0 0.0
    %2015 = vmatpush.msra.mxu0 0.0
    %2016 = vmatpush.msra.mxu0 0.0
    %2017 = vmatpush.msra.mxu0 0.0
    %2018 = vmatpush.msra.mxu0 0.0
    %2019 = vmatpush.msra.mxu0 0.0
    %2020 = vmatpush.msra.mxu0 0.0
    %2021 = vmatpush.msra.mxu0 0.0
    %2022 = vmatpush.msra.mxu0 0.0
    %2023 = vmatpush.msra.mxu0 0.0
    %2024 = vmatpush.msra.mxu0 %v2007
    %2025 = vmatpush.msra.mxu0 %v2006
    %2026 = vmatpush.msra.mxu0 %v2005
    %2027 = vmatpush.msra.mxu0 %v2004
    %2028 = vmatmul.f32.gmra.mxu0 %v2010
    %v2029 = vpop.f32.mrf.mxu0
    %v2030 = vadd.f32 %v2008, %v2029
    %2031 = vdwg.mxu0
    %vm2032 = vcmask 25600
    %2033 = vst.msk [vmem:[#allocation10] sm:$0x3] %vm2032, %v2030
    // Predicated region
    $region54: #{tpu_custom_call.1} parent=1 // pred_check
      _
    $region55: #{tpu_custom_call.1} parent=1 // pred_check_branch
      %2035 = sbr.rel (0) target = $region57
    $region56: #{tpu_custom_call.1} parent=1 // pred_region
      %2037 = vsyncadd [#allocation4], 0
      %s2039 = sshll.u32 [#allocation10], 4
      %s2040 = int_to_ptr.vmem [resolvable:$true] %s2039
      %s2041 = sshll.u32 %s9, 4
      %s2042 = int_to_ptr.hbm [resolvable:$true] %s2041
      %2044 = dma.vmem_to_hbm [thread:$0]  %s2040, 32, %s2042, [#allocation4]
    $region57: #{tpu_custom_call.1} parent=1 // pred_fallthru
      _
    // Predicated region
    $region58: #{tpu_custom_call.1} parent=1 // pred_check
      _
    $region59: #{tpu_custom_call.1} parent=1 // pred_check_branch
      %2046 = sbr.rel (0) target = $region61
    $region60: #{tpu_custom_call.1} parent=1 // pred_region
      %2048 = dma.done [#allocation4], 32
    $region61: #{tpu_custom_call.1} parent=1 // pred_fallthru
      _
    %2049 = vsyncpa [#allocation3], 1
    %2050 = vsyncpa [#allocation6], 1
    %2051 = vsyncpa [#allocation9], 1
    %2052 = vsyncpa [#allocation4], 1

</llo_original>
